<compile_context>
chip_gen: v7x
topology: tpu7x:2x2x1
jax: 0.10.0
libtpu: 0.0.40
codegen_flags: <defaults>
</compile_context>

<pallas_src>
import math

import jax
import jax.numpy as jnp
from jax import lax
from jax.experimental import pallas as pl
from jax.experimental.pallas import tpu as pltpu


# ---------------------------------------------------------------------------
# Generation-aware blocking / VMEM configuration
# ---------------------------------------------------------------------------
def _chip_config():
    try:
        kind = jax.devices()[0].device_kind.lower()
    except Exception:
        kind = ""
    if "v7" in kind or "7x" in kind:
        # v7x: 64 MiB physical VMEM per TC, 2 TensorCores per chip.
        return {"two_tc": True, "budget": 20 << 20, "vmem_limit": 48 << 20, "max_bb": 16}
    if "v6" in kind:
        # v6e: single TC, 128 MiB physical VMEM -> big blocks amortize per-step overhead.
        return {"two_tc": False, "budget": 48 << 20, "vmem_limit": 100 << 20, "max_bb": 32}
    if "v5" in kind and ("lite" in kind or "5e" in kind):
        # v5e: single TC, 16 MiB scoped default -> raise the limit, modest budget.
        return {"two_tc": False, "budget": 24 << 20, "vmem_limit": 64 << 20, "max_bb": 16}
    # Unknown generation: conservative numbers that fit every chip.
    return {"two_tc": False, "budget": 20 << 20, "vmem_limit": 48 << 20, "max_bb": 16}


def _largest_divisor_leq(n, cap):
    for d in range(max(1, min(n, cap)), 0, -1):
        if n % d == 0:
            return d
    return 1


def _pick_block_b(B, per_batch_bytes, cfg):
    cap = max(1, min(cfg["max_bb"], cfg["budget"] // max(per_batch_bytes, 1)))
    bb = _largest_divisor_leq(B, cap)
    # Only force >=2 grid steps when there are 2 TensorCores to shard across (v7x).
    if cfg["two_tc"] and B >= 2 and B // bb < 2:
        bb = _largest_divisor_leq(B, max(1, B // 2))
    return bb


def _pick_row_tile(L, cap=512):
    """Gram row tile: divides L and is a multiple of 8 (or equals L)."""
    if L <= cap:
        return L
    best = None
    for d in range(8, cap + 1, 8):
        if L % d == 0:
            best = d
    return best if best else L


def _pick_tau_tile(L):
    for cand in (16, 8):
        if L % cand == 0:
            return cand
    return L


# ---------------------------------------------------------------------------
# Kernel 1 (default path): channel-summed circular cross-correlation.
#   out[b, tau] = sum_{c,t} q[b,t,c] * k[b,(t-tau)%L,c]
# MXU Gram tile g[b,u,w] = sum_c k[b,u,c]*q[b,w,c] followed by a wrapped-
# diagonal reduction: roll row u left by u (static XLU lane rotations gated by
# VPU selects on the row-index bits), then column-sum.  The Gram row axis is a
# second "arbitrary" grid axis; the (bb,1,L) output is resident across it.
# ---------------------------------------------------------------------------
def _mean_corr_kernel(k_ref, q_ref, out_ref):
    u_blk = pl.program_id(1)
    k = k_ref[...]                       # (bb, TU, C)
    q = q_ref[...]                       # (bb, L,  C)
    bb, TU, _ = k.shape
    L = q.shape[1]
    NU = L // TU                         # static

    # MXU: contraction on the last dim of both operands (supported pattern).
    g = jnp.einsum('buc,bwc->buw', k, q, preferred_element_type=jnp.float32)

    # Align wrapped diagonals: r[b,u,j] = g[b,u,(j + u0 + u) % L],  u0 = u_blk*TU.
    r = g
    # (a) block offset u0, decomposed over the bits of u_blk (scalar selects).
    for bit in range(max(0, (NU - 1).bit_length())):
        amt = (TU << bit) % L
        if amt == 0:
            continue
        cand = pltpu.roll(r, (L - amt) % L, axis=2)      # roll left by amt (XLU)
        take = ((u_blk >> bit) & 1) == 1
        r = jnp.where(take, cand, r)
    # (b) per-row local offset u, decomposed over the bits of the row iota.
    row = lax.broadcasted_iota(jnp.int32, (bb, TU, 1), 1)
    for bit in range((TU - 1).bit_length()):
        amt = (1 << bit) % L
        if amt == 0:
            continue
        cand = pltpu.roll(r, (L - amt) % L, axis=2)
        r = jnp.where(((row >> bit) & 1) == 1, cand, r)

    partial = jnp.sum(r, axis=1, keepdims=True)          # (bb, 1, L)

    @pl.when(u_blk == 0)
    def _():
        out_ref[...] = jnp.zeros_like(out_ref)
    out_ref[...] += partial


def _mean_corr_sum(k2, q2, block_b, row_tile, cfg):
    B, L, C = q2.shape
    return pl.pallas_call(
        _mean_corr_kernel,
        out_shape=jax.ShapeDtypeStruct((B, 1, L), jnp.float32),
        grid=(B // block_b, L // row_tile),
        in_specs=[pl.BlockSpec((block_b, row_tile, C), lambda b, u: (b, u, 0)),
                  pl.BlockSpec((block_b, L, C), lambda b, u: (b, 0, 0))],
        out_specs=pl.BlockSpec((block_b, 1, L), lambda b, u: (b, 0, 0)),
        compiler_params=pltpu.CompilerParams(
            dimension_semantics=("parallel", "arbitrary"),
            vmem_limit_bytes=cfg["vmem_limit"]),
    )(k2, q2)


# ---------------------------------------------------------------------------
# Kernel 1b (only when output_attention=True): full correlation map.
#   corr[b, tau, c] = sum_t q[b,t,c] * k[b,(t-tau)%L,c]
# tau is tiled by an "arbitrary" grid axis; a VMEM scratch carries k rolled by
# the current lag across steps (one static pltpu.roll per lag), and each lag's
# row is stored directly at a static offset (no O(L*C) where-accumulate).
# ---------------------------------------------------------------------------
def _full_corr_kernel(q_ref, k_ref, o_ref, kroll_ref):
    @pl.when(pl.program_id(1) == 0)
    def _():
        kroll_ref[...] = k_ref[...]

    q = q_ref[...]                        # (bb, L, C), resident across tau
    TT = o_ref.shape[1]
    for j in range(TT):                   # static unroll (TT is 8/16)
        kr = kroll_ref[...]               # kr[t] = k[(t - tau) % L]
        o_ref[:, pl.ds(j, 1), :] = jnp.sum(q * kr, axis=1, keepdims=True)
        kroll_ref[...] = pltpu.roll(kr, 1, axis=1)   # advance to the next lag


def _full_corr(q2, k2, block_b, tau_tile, cfg):
    B, L, C = q2.shape
    return pl.pallas_call(
        _full_corr_kernel,
        out_shape=jax.ShapeDtypeStruct((B, L, C), jnp.float32),
        grid=(B // block_b, L // tau_tile),
        in_specs=[pl.BlockSpec((block_b, L, C), lambda b, t: (b, 0, 0)),
                  pl.BlockSpec((block_b, L, C), lambda b, t: (b, 0, 0))],
        out_specs=pl.BlockSpec((block_b, tau_tile, C), lambda b, t: (b, t, 0)),
        scratch_shapes=[pltpu.VMEM((block_b, L, C), jnp.float32)],
        compiler_params=pltpu.CompilerParams(
            dimension_semantics=("parallel", "arbitrary"),
            vmem_limit_bytes=cfg["vmem_limit"]),
    )(q2, k2)


# ---------------------------------------------------------------------------
# Kernel 2: time-delay aggregation.
#   out[b,t,c] = sum_i w[b,i] * v[b, (t + d_i) % L, c]
# Delays d_i arrive via scalar prefetch (SMEM); each delay is applied as a
# binary-decomposed sequence of static XLU time-axis rolls gated by scalar
# selects, then FMA-accumulated with the f32 softmax weight.  No dense LxL
# aggregation matrix, no padding, no bf16 rounding of the weights.
# ---------------------------------------------------------------------------
def _agg_kernel(idx_ref, w_ref, v_ref, o_ref):
    v = v_ref[...]                        # (bb, L, C2) f32
    w = w_ref[...]                        # (bb, 1, top_k) f32
    bb, L, C2 = v.shape
    top_k = idx_ref.shape[0]
    nbits = (L - 1).bit_length()

    acc = jnp.zeros((bb, L, C2), jnp.float32)
    for i in range(top_k):                # static unroll: top_k ~ log(L)
        d = idx_ref[i]                    # scalar int32 from SMEM
        rolled = v
        for bit in range(nbits):
            amt = 1 << bit
            cand = pltpu.roll(rolled, (L - amt) % L, axis=1)   # roll left by amt
            take = ((d >> bit) & 1) == 1
            rolled = jnp.where(take, cand, rolled)
        acc = acc + rolled * w[:, :, i:i + 1]
    o_ref[...] = acc


def _time_delay_aggregate(index, weights3, v2, block_b, cfg):
    B, L, C2 = v2.shape
    top_k = index.shape[0]
    return pl.pallas_call(
        _agg_kernel,
        out_shape=jax.ShapeDtypeStruct((B, L, C2), jnp.float32),
        grid_spec=pltpu.PrefetchScalarGridSpec(
            num_scalar_prefetch=1,
            grid=(B // block_b,),
            in_specs=[pl.BlockSpec((block_b, 1, top_k), lambda b, idx: (b, 0, 0)),
                      pl.BlockSpec((block_b, L, C2), lambda b, idx: (b, 0, 0))],
            out_specs=pl.BlockSpec((block_b, L, C2), lambda b, idx: (b, 0, 0))),
        compiler_params=pltpu.CompilerParams(
            dimension_semantics=("parallel",),
            vmem_limit_bytes=cfg["vmem_limit"]),
    )(index, weights3, v2)


# ---------------------------------------------------------------------------
# Forward (mirrors AutoCorrelation.forward, training branch).
# ---------------------------------------------------------------------------
def autocorrelation_forward(queries, keys, values, attn_mask=None,
                            factor=1, output_attention=False):
    B, L, H, E = queries.shape
    _, S, _, D = values.shape
    queries = queries.astype(jnp.float32)
    keys = keys.astype(jnp.float32)
    values = values.astype(jnp.float32)
    if L > S:
        zeros = jnp.zeros_like(queries[:, :L - S, :, :])
        values = jnp.concatenate([values, zeros], axis=1)
        keys = jnp.concatenate([keys, zeros], axis=1)
    else:
        values = values[:, :L, :, :]
        keys = keys[:, :L, :, :]

    cfg = _chip_config()

    # Time-major / channel-last layout: free reshapes, lane-dense channel dim.
    C = H * E
    q2 = queries.reshape(B, L, C)
    k2 = keys.reshape(B, L, C)

    # (1) Period-based dependency discovery (no padding of L: the (t-tau)%L
    # wraparound must see the true period).  f32 correlation math.
    if output_attention:
        tau_tile = _pick_tau_tile(L)
        per_batch = 4 * (4 * L * C + 2 * tau_tile * C + 3 * L * C)
        bb = _pick_block_b(B, per_batch, cfg)
        corr_blc = _full_corr(q2, k2, bb, tau_tile, cfg)        # (B, L, H*E)
        mean_value = jnp.mean(corr_blc, axis=2)                 # (B, L)
        attn = corr_blc.reshape(B, L, H, E)                     # == corr.permute(0,3,1,2)
    else:
        row_tile = _pick_row_tile(L)
        # Budget: double-buffered inputs + output + live Gram/roll temporaries.
        per_batch = 4 * (2 * (row_tile * C + L * C) + 2 * L + 4 * row_tile * L)
        bb = _pick_block_b(B, per_batch, cfg)
        mean_value = _mean_corr_sum(k2, q2, bb, row_tile, cfg)[:, 0, :] / C
        attn = None

    # (2) Time-delay aggregation: tiny data-dependent top-k / softmax in glue.
    top_k = max(1, int(factor * math.log(L)))    # torch can hit 0 for tiny L
    _, index = lax.top_k(jnp.mean(mean_value, axis=0), top_k)      # (top_k,)
    weights = jnp.take(mean_value, index, axis=1)                  # (B, top_k)
    tmp_corr = jax.nn.softmax(weights, axis=-1)                    # (B, top_k) f32

    C2 = H * D
    v2 = values.reshape(B, L, C2)
    per_batch = 4 * (7 * L * C2)
    bb_agg = _pick_block_b(B, per_batch, cfg)
    out = _time_delay_aggregate(index.astype(jnp.int32),
                                tmp_corr.reshape(B, 1, top_k),
                                v2, bb_agg, cfg)                   # (B, L, C2) f32
    V = out.reshape(B, L, H, D)

    if output_attention:
        return V, attn
    return V, None


# ---------------------------------------------------------------------------
# Pure-JAX FFT-based reference (mirrors the torch code) for correctness check.
# ---------------------------------------------------------------------------
def reference_forward(queries, keys, values, factor=1):
    B, L, H, E = queries.shape
    _, S, _, D = values.shape
    if L > S:
        zeros = jnp.zeros_like(queries[:, :L - S, :, :])
        values = jnp.concatenate([values, zeros], axis=1)
        keys = jnp.concatenate([keys, zeros], axis=1)
    else:
        values = values[:, :L, :, :]
        keys = keys[:, :L, :, :]
    q = jnp.transpose(queries, (0, 2, 3, 1))
    k = jnp.transpose(keys, (0, 2, 3, 1))
    v = jnp.transpose(values, (0, 2, 3, 1))
    qf = jnp.fft.rfft(q, axis=-1)
    kf = jnp.fft.rfft(k, axis=-1)
    corr = jnp.fft.irfft(qf * jnp.conj(kf), n=L, axis=-1)           # (B, H, E, L)
    top_k = max(1, int(factor * math.log(L)))
    mean_value = jnp.mean(jnp.mean(corr, axis=1), axis=1)
    _, index = lax.top_k(jnp.mean(mean_value, axis=0), top_k)
    weights = jnp.take(mean_value, index, axis=1)
    tmp_corr = jax.nn.softmax(weights, axis=-1)
    agg = jnp.zeros_like(v)
    for i in range(top_k):
        pattern = jnp.roll(v, -index[i], axis=-1)
        agg = agg + pattern * tmp_corr[:, i][:, None, None, None]
    V = jnp.transpose(agg, (0, 3, 1, 2))                            # (B, L, H, D)
    return V, corr


if __name__ == "__main__":
    B, L, S, H, E, D = 2, 128, 128, 2, 8, 8
    key = jax.random.PRNGKey(0)
    kq, kk, kv = jax.random.split(key, 3)
    queries = jax.random.normal(kq, (B, L, H, E), dtype=jnp.float32)
    keys_ = jax.random.normal(kk, (B, S, H, E), dtype=jnp.float32)
    values = jax.random.normal(kv, (B, S, H, D), dtype=jnp.float32)

    V_ref, corr_ref = reference_forward(queries, keys_, values)

    # Default path (output_attention=False).
    V, attn = autocorrelation_forward(queries, keys_, values, attn_mask=None)
    V = jax.block_until_ready(V)
    assert V.shape == (B, L, H, D)
    assert attn is None
    # Tolerance covers FFT-vs-direct roundoff plus MXU multi-pass f32 matmul on
    # the correlation Gram; an algorithmic error would show up as O(1).
    assert jnp.allclose(V, V_ref, atol=3e-2, rtol=3e-2), "V mismatch vs FFT reference"

    # output_attention=True path (full correlation map returned as attention).
    V2, attn2 = autocorrelation_forward(queries, keys_, values, attn_mask=None,
                                        output_attention=True)
    V2 = jax.block_until_ready(V2)
    attn_ref = jnp.transpose(corr_ref, (0, 3, 1, 2))                 # (B, L, H, E)
    assert attn2.shape == (B, L, H, E)
    assert jnp.allclose(attn2, attn_ref, atol=2e-3, rtol=2e-3), "attn mismatch vs FFT reference"
    assert jnp.allclose(V2, V_ref, atol=3e-2, rtol=3e-2), "V mismatch (attention path)"
    print("KERNEL_OK")
</pallas_src>

<mosaic_0001>
module attributes {stable_mosaic.version = 11 : i64} {
  func.func @_mean_corr_kernel(%arg0: i32, %arg1: i32, %arg2: memref<2x128x16xf32, #tpu.memory_space<vmem>>, %arg3: memref<2x128x16xf32, #tpu.memory_space<vmem>>, %arg4: memref<2x1x128xf32, #tpu.memory_space<vmem>>) attributes {dimension_semantics = [#tpu.dimension_semantics<parallel>, #tpu.dimension_semantics<arbitrary>], iteration_bounds = array<i64: 1, 1>, scalar_prefetch = 0 : i64, scratch_operands = 0 : i64, tpu.core_type = #tpu.core_type<tc>, window_params = [{transform_indices = @transform_0, window_bounds = array<i64: 2, 128, 16>}, {transform_indices = @transform_1, window_bounds = array<i64: 2, 128, 16>}, {transform_indices = @transform_2, window_bounds = array<i64: 2, 1, 128>}]} {
    %c0 = arith.constant 0 : index
    %c0_0 = arith.constant 0 : index
    %c0_1 = arith.constant 0 : index
    %0 = vector.load %arg2[%c0, %c0_0, %c0_1] : memref<2x128x16xf32, #tpu.memory_space<vmem>>, vector<2x128x16xf32>
    %c0_2 = arith.constant 0 : index
    %c0_3 = arith.constant 0 : index
    %c0_4 = arith.constant 0 : index
    %1 = vector.load %arg3[%c0_2, %c0_3, %c0_4] : memref<2x128x16xf32, #tpu.memory_space<vmem>>, vector<2x128x16xf32>
    "tpu.trace_start"() <{level = 10 : i32, message = "buc,bwc->buw"}> : () -> ()
    %cst = arith.constant dense<0.000000e+00> : vector<2x128x128xf32>
    %2 = tpu.matmul %0, %1, %cst {dimension_numbers = #tpu.dot_dimension_numbers<[2], [2], [1], [1], [0, 0, 0, 1, 1, 1], [0], [0]>} : vector<2x128x16xf32>, vector<2x128x16xf32>, vector<2x128x128xf32> -> vector<2x128x128xf32>
    "tpu.trace_stop"() : () -> ()
    %3 = tpu.iota {dimensions = array<i32: 1>} : vector<2x128x1xi32>
    %c127_i32 = arith.constant 127 : i32
    %4 = tpu.dynamic_rotate %2 by %c127_i32 dim 2 : vector<2x128x128xf32>, i32 -> vector<2x128x128xf32>
    %c0_i32 = arith.constant 0 : i32
    %5 = vector.broadcast %c0_i32 : i32 to vector<2x128x1xi32>
    %6 = arith.shrsi %3, %5 : vector<2x128x1xi32>
    %c1_i32 = arith.constant 1 : i32
    %7 = vector.broadcast %c1_i32 : i32 to vector<2x128x1xi32>
    %8 = arith.andi %6, %7 : vector<2x128x1xi32>
    %c1_i32_5 = arith.constant 1 : i32
    %9 = vector.broadcast %c1_i32_5 : i32 to vector<2x128x1xi32>
    %10 = arith.cmpi eq, %8, %9 : vector<2x128x1xi32>
    %11 = vector.shape_cast %10 : vector<2x128x1xi1> to vector<2x128x1xi1>
    %12 = vector.broadcast %11 : vector<2x128x1xi1> to vector<2x128x128xi1>
    %13 = arith.select %12, %4, %2 : vector<2x128x128xi1>, vector<2x128x128xf32>
    %c126_i32 = arith.constant 126 : i32
    %14 = tpu.dynamic_rotate %13 by %c126_i32 dim 2 : vector<2x128x128xf32>, i32 -> vector<2x128x128xf32>
    %c1_i32_6 = arith.constant 1 : i32
    %15 = vector.broadcast %c1_i32_6 : i32 to vector<2x128x1xi32>
    %16 = arith.shrsi %3, %15 : vector<2x128x1xi32>
    %c1_i32_7 = arith.constant 1 : i32
    %17 = vector.broadcast %c1_i32_7 : i32 to vector<2x128x1xi32>
    %18 = arith.andi %16, %17 : vector<2x128x1xi32>
    %c1_i32_8 = arith.constant 1 : i32
    %19 = vector.broadcast %c1_i32_8 : i32 to vector<2x128x1xi32>
    %20 = arith.cmpi eq, %18, %19 : vector<2x128x1xi32>
    %21 = vector.shape_cast %20 : vector<2x128x1xi1> to vector<2x128x1xi1>
    %22 = vector.broadcast %21 : vector<2x128x1xi1> to vector<2x128x128xi1>
    %23 = arith.select %22, %14, %13 : vector<2x128x128xi1>, vector<2x128x128xf32>
    %c124_i32 = arith.constant 124 : i32
    %24 = tpu.dynamic_rotate %23 by %c124_i32 dim 2 : vector<2x128x128xf32>, i32 -> vector<2x128x128xf32>
    %c2_i32 = arith.constant 2 : i32
    %25 = vector.broadcast %c2_i32 : i32 to vector<2x128x1xi32>
    %26 = arith.shrsi %3, %25 : vector<2x128x1xi32>
    %c1_i32_9 = arith.constant 1 : i32
    %27 = vector.broadcast %c1_i32_9 : i32 to vector<2x128x1xi32>
    %28 = arith.andi %26, %27 : vector<2x128x1xi32>
    %c1_i32_10 = arith.constant 1 : i32
    %29 = vector.broadcast %c1_i32_10 : i32 to vector<2x128x1xi32>
    %30 = arith.cmpi eq, %28, %29 : vector<2x128x1xi32>
    %31 = vector.shape_cast %30 : vector<2x128x1xi1> to vector<2x128x1xi1>
    %32 = vector.broadcast %31 : vector<2x128x1xi1> to vector<2x128x128xi1>
    %33 = arith.select %32, %24, %23 : vector<2x128x128xi1>, vector<2x128x128xf32>
    %c120_i32 = arith.constant 120 : i32
    %34 = tpu.dynamic_rotate %33 by %c120_i32 dim 2 : vector<2x128x128xf32>, i32 -> vector<2x128x128xf32>
    %c3_i32 = arith.constant 3 : i32
    %35 = vector.broadcast %c3_i32 : i32 to vector<2x128x1xi32>
    %36 = arith.shrsi %3, %35 : vector<2x128x1xi32>
    %c1_i32_11 = arith.constant 1 : i32
    %37 = vector.broadcast %c1_i32_11 : i32 to vector<2x128x1xi32>
    %38 = arith.andi %36, %37 : vector<2x128x1xi32>
    %c1_i32_12 = arith.constant 1 : i32
    %39 = vector.broadcast %c1_i32_12 : i32 to vector<2x128x1xi32>
    %40 = arith.cmpi eq, %38, %39 : vector<2x128x1xi32>
    %41 = vector.shape_cast %40 : vector<2x128x1xi1> to vector<2x128x1xi1>
    %42 = vector.broadcast %41 : vector<2x128x1xi1> to vector<2x128x128xi1>
    %43 = arith.select %42, %34, %33 : vector<2x128x128xi1>, vector<2x128x128xf32>
    %c112_i32 = arith.constant 112 : i32
    %44 = tpu.dynamic_rotate %43 by %c112_i32 dim 2 : vector<2x128x128xf32>, i32 -> vector<2x128x128xf32>
    %c4_i32 = arith.constant 4 : i32
    %45 = vector.broadcast %c4_i32 : i32 to vector<2x128x1xi32>
    %46 = arith.shrsi %3, %45 : vector<2x128x1xi32>
    %c1_i32_13 = arith.constant 1 : i32
    %47 = vector.broadcast %c1_i32_13 : i32 to vector<2x128x1xi32>
    %48 = arith.andi %46, %47 : vector<2x128x1xi32>
    %c1_i32_14 = arith.constant 1 : i32
    %49 = vector.broadcast %c1_i32_14 : i32 to vector<2x128x1xi32>
    %50 = arith.cmpi eq, %48, %49 : vector<2x128x1xi32>
    %51 = vector.shape_cast %50 : vector<2x128x1xi1> to vector<2x128x1xi1>
    %52 = vector.broadcast %51 : vector<2x128x1xi1> to vector<2x128x128xi1>
    %53 = arith.select %52, %44, %43 : vector<2x128x128xi1>, vector<2x128x128xf32>
    %c96_i32 = arith.constant 96 : i32
    %54 = tpu.dynamic_rotate %53 by %c96_i32 dim 2 : vector<2x128x128xf32>, i32 -> vector<2x128x128xf32>
    %c5_i32 = arith.constant 5 : i32
    %55 = vector.broadcast %c5_i32 : i32 to vector<2x128x1xi32>
    %56 = arith.shrsi %3, %55 : vector<2x128x1xi32>
    %c1_i32_15 = arith.constant 1 : i32
    %57 = vector.broadcast %c1_i32_15 : i32 to vector<2x128x1xi32>
    %58 = arith.andi %56, %57 : vector<2x128x1xi32>
    %c1_i32_16 = arith.constant 1 : i32
    %59 = vector.broadcast %c1_i32_16 : i32 to vector<2x128x1xi32>
    %60 = arith.cmpi eq, %58, %59 : vector<2x128x1xi32>
    %61 = vector.shape_cast %60 : vector<2x128x1xi1> to vector<2x128x1xi1>
    %62 = vector.broadcast %61 : vector<2x128x1xi1> to vector<2x128x128xi1>
    %63 = arith.select %62, %54, %53 : vector<2x128x128xi1>, vector<2x128x128xf32>
    %c64_i32 = arith.constant 64 : i32
    %64 = tpu.dynamic_rotate %63 by %c64_i32 dim 2 : vector<2x128x128xf32>, i32 -> vector<2x128x128xf32>
    %c6_i32 = arith.constant 6 : i32
    %65 = vector.broadcast %c6_i32 : i32 to vector<2x128x1xi32>
    %66 = arith.shrsi %3, %65 : vector<2x128x1xi32>
    %c1_i32_17 = arith.constant 1 : i32
    %67 = vector.broadcast %c1_i32_17 : i32 to vector<2x128x1xi32>
    %68 = arith.andi %66, %67 : vector<2x128x1xi32>
    %c1_i32_18 = arith.constant 1 : i32
    %69 = vector.broadcast %c1_i32_18 : i32 to vector<2x128x1xi32>
    %70 = arith.cmpi eq, %68, %69 : vector<2x128x1xi32>
    %71 = vector.shape_cast %70 : vector<2x128x1xi1> to vector<2x128x1xi1>
    %72 = vector.broadcast %71 : vector<2x128x1xi1> to vector<2x128x128xi1>
    %73 = arith.select %72, %64, %63 : vector<2x128x128xi1>, vector<2x128x128xf32>
    %cst_19 = arith.constant dense<0.000000e+00> : vector<2x128xf32>
    %74 = vector.multi_reduction <add>, %73, %cst_19 [1] : vector<2x128x128xf32> to vector<2x128xf32>
    %75 = vector.shape_cast %74 : vector<2x128xf32> to vector<2x1x128xf32>
    %c0_i32_20 = arith.constant 0 : i32
    %76 = arith.cmpi eq, %arg1, %c0_i32_20 : i32
    %77 = arith.extui %76 : i1 to i32
    %c0_i32_21 = arith.constant 0 : i32
    %78 = arith.cmpi ne, %77, %c0_i32_21 : i32
    scf.if %78 {
      %cst_28 = arith.constant 0.000000e+00 : f32
      %82 = vector.broadcast %cst_28 : f32 to vector<2x1x128xf32>
      %c0_29 = arith.constant 0 : index
      %c0_30 = arith.constant 0 : index
      %c0_31 = arith.constant 0 : index
      %83 = vector.load %arg4[%c0_29, %c0_30, %c0_31] : memref<2x1x128xf32, #tpu.memory_space<vmem>>, vector<2x1x128xf32>
      tpu.vector_store %arg4[%c0_29, %c0_30, %c0_31], %82 {strides = array<i32>} : memref<2x1x128xf32, #tpu.memory_space<vmem>>, vector<2x1x128xf32>,
    } else {
    }
    %c0_22 = arith.constant 0 : index
    %c0_23 = arith.constant 0 : index
    %c0_24 = arith.constant 0 : index
    %79 = vector.load %arg4[%c0_22, %c0_23, %c0_24] : memref<2x1x128xf32, #tpu.memory_space<vmem>>, vector<2x1x128xf32>
    %80 = arith.addf %79, %75 : vector<2x1x128xf32>
    %c0_25 = arith.constant 0 : index
    %c0_26 = arith.constant 0 : index
    %c0_27 = arith.constant 0 : index
    %81 = vector.load %arg4[%c0_25, %c0_26, %c0_27] : memref<2x1x128xf32, #tpu.memory_space<vmem>>, vector<2x1x128xf32>
    tpu.vector_store %arg4[%c0_25, %c0_26, %c0_27], %80 {strides = array<i32>} : memref<2x1x128xf32, #tpu.memory_space<vmem>>, vector<2x1x128xf32>,
    return
  }
  func.func @transform_0(%arg0: i32, %arg1: i32) -> (i32, i32, i32) {
    %c0_i32 = arith.constant 0 : i32
    %c0_i32_0 = arith.constant 0 : i32
    return %arg0, %arg1, %c0_i32 : i32, i32, i32
  }
  func.func @transform_1(%arg0: i32, %arg1: i32) -> (i32, i32, i32) {
    %c0_i32 = arith.constant 0 : i32
    %c0_i32_0 = arith.constant 0 : i32
    %c0_i32_1 = arith.constant 0 : i32
    return %arg0, %c0_i32, %c0_i32_0 : i32, i32, i32
  }
  func.func @transform_2(%arg0: i32, %arg1: i32) -> (i32, i32, i32) {
    %c0_i32 = arith.constant 0 : i32
    %c0_i32_0 = arith.constant 0 : i32
    %c0_i32_1 = arith.constant 0 : i32
    return %arg0, %c0_i32, %c0_i32_0 : i32, i32, i32
  }
}

</mosaic_0001>

<llo_original>
// kernel: tpu_custom_call.1
$region0: #{tpu_custom_call.1}
  #allocation0 [shape = 'u32[]', space=smem, size = 0x4, offset = 0x4, fixed_abs, tag = 'smem constant byte address 0x4 - core index']
  #allocation1 [shape = 'u32[144,128]{1,0:T(1,128)}', space=vmem, size = 0x12000, scoped, tag = 'internal scratch']
  %s0 = inlined_call_operand.vmem [shape: f32[2,128,16], index: 0, kind: input, shape index: {}]
  %s1 = inlined_call_operand.vmem [shape: f32[2,128,16], index: 1, kind: input, shape index: {}]
  %s2 = inlined_call_operand.hbm [shape: f32[2,1,128], index: 2, kind: output, shape index: {}]
  %s3 = sld [smem:[#allocation0]]
  $region22: #{tpu_custom_call.1} parent=0
    _
  %s5 = ssub.s32 1, %s3
  %s6 = scalar_select 0, %s5, %s3
  $region1: #{tpu_custom_call.1} parent=0
    #allocation2 [shape = 'u8[1024]{0}', space=vmem, size = 0x400, scoped, tag = 'output window, operand 0, single buffered']
    #allocation3 [shape = 's32[1]{0}', space=sflag, size = 0x4, scoped, tag = 'scoped memory for tpu_custom_call.1']
    %7 = vsyncpa [#allocation3], 0
    // Predicated region
    $region2: #{tpu_custom_call.1} parent=1 // pred_check
      _
    $region3: #{tpu_custom_call.1} parent=1 // pred_check_branch
      %9 = sbr.rel (0) target = $region5
    $region4: #{tpu_custom_call.1} parent=1 // pred_region
      _
    $region5: #{tpu_custom_call.1} parent=1 // pred_fallthru
      _
    // Predicated region
    $region6: #{tpu_custom_call.1} parent=1 // pred_check
      _
    $region7: #{tpu_custom_call.1} parent=1 // pred_check_branch
      %11 = sbr.rel (0) target = $region9
    $region8: #{tpu_custom_call.1} parent=1 // pred_region
      _
    $region9: #{tpu_custom_call.1} parent=1 // pred_fallthru
      _
    %v12 = vld [vmem:[%s0] sm:$0xff]
    %v13 = vld [vmem:[%s0 + $0x8] sm:$0xff]
    %v14 = vld [vmem:[%s0 + $0x10] sm:$0xff]
    %v15 = vld [vmem:[%s0 + $0x18] sm:$0xff]
    %v16 = vld [vmem:[%s0 + $0x20] sm:$0xff]
    %v17 = vld [vmem:[%s0 + $0x28] sm:$0xff]
    %v18 = vld [vmem:[%s0 + $0x30] sm:$0xff]
    %v19 = vld [vmem:[%s0 + $0x38] sm:$0xff]
    %v20 = vld [vmem:[%s0 + $0x40] sm:$0xff]
    %v21 = vld [vmem:[%s0 + $0x48] sm:$0xff]
    %v22 = vld [vmem:[%s0 + $0x50] sm:$0xff]
    %v23 = vld [vmem:[%s0 + $0x58] sm:$0xff]
    %v24 = vld [vmem:[%s0 + $0x60] sm:$0xff]
    %v25 = vld [vmem:[%s0 + $0x68] sm:$0xff]
    %v26 = vld [vmem:[%s0 + $0x70] sm:$0xff]
    %v27 = vld [vmem:[%s0 + $0x78] sm:$0xff]
    %v28 = vld [vmem:[%s0 + $0x80] sm:$0xff]
    %v29 = vld [vmem:[%s0 + $0x88] sm:$0xff]
    %v30 = vld [vmem:[%s0 + $0x90] sm:$0xff]
    %v31 = vld [vmem:[%s0 + $0x98] sm:$0xff]
    %v32 = vld [vmem:[%s0 + $0xa0] sm:$0xff]
    %v33 = vld [vmem:[%s0 + $0xa8] sm:$0xff]
    %v34 = vld [vmem:[%s0 + $0xb0] sm:$0xff]
    %v35 = vld [vmem:[%s0 + $0xb8] sm:$0xff]
    %v36 = vld [vmem:[%s0 + $0xc0] sm:$0xff]
    %v37 = vld [vmem:[%s0 + $0xc8] sm:$0xff]
    %v38 = vld [vmem:[%s0 + $0xd0] sm:$0xff]
    %v39 = vld [vmem:[%s0 + $0xd8] sm:$0xff]
    %v40 = vld [vmem:[%s0 + $0xe0] sm:$0xff]
    %v41 = vld [vmem:[%s0 + $0xe8] sm:$0xff]
    %v42 = vld [vmem:[%s0 + $0xf0] sm:$0xff]
    %v43 = vld [vmem:[%s0 + $0xf8] sm:$0xff]
    %v44 = vld [vmem:[%s1] sm:$0xff]
    %v45 = vld [vmem:[%s1 + $0x8] sm:$0xff]
    %v46 = vld [vmem:[%s1 + $0x10] sm:$0xff]
    %v47 = vld [vmem:[%s1 + $0x18] sm:$0xff]
    %v48 = vld [vmem:[%s1 + $0x20] sm:$0xff]
    %v49 = vld [vmem:[%s1 + $0x28] sm:$0xff]
    %v50 = vld [vmem:[%s1 + $0x30] sm:$0xff]
    %v51 = vld [vmem:[%s1 + $0x38] sm:$0xff]
    %v52 = vld [vmem:[%s1 + $0x40] sm:$0xff]
    %v53 = vld [vmem:[%s1 + $0x48] sm:$0xff]
    %v54 = vld [vmem:[%s1 + $0x50] sm:$0xff]
    %v55 = vld [vmem:[%s1 + $0x58] sm:$0xff]
    %v56 = vld [vmem:[%s1 + $0x60] sm:$0xff]
    %v57 = vld [vmem:[%s1 + $0x68] sm:$0xff]
    %v58 = vld [vmem:[%s1 + $0x70] sm:$0xff]
    %v59 = vld [vmem:[%s1 + $0x78] sm:$0xff]
    %v60 = vld [vmem:[%s1 + $0x80] sm:$0xff]
    %v61 = vld [vmem:[%s1 + $0x88] sm:$0xff]
    %v62 = vld [vmem:[%s1 + $0x90] sm:$0xff]
    %v63 = vld [vmem:[%s1 + $0x98] sm:$0xff]
    %v64 = vld [vmem:[%s1 + $0xa0] sm:$0xff]
    %v65 = vld [vmem:[%s1 + $0xa8] sm:$0xff]
    %v66 = vld [vmem:[%s1 + $0xb0] sm:$0xff]
    %v67 = vld [vmem:[%s1 + $0xb8] sm:$0xff]
    %v68 = vld [vmem:[%s1 + $0xc0] sm:$0xff]
    %v69 = vld [vmem:[%s1 + $0xc8] sm:$0xff]
    %v70 = vld [vmem:[%s1 + $0xd0] sm:$0xff]
    %v71 = vld [vmem:[%s1 + $0xd8] sm:$0xff]
    %v72 = vld [vmem:[%s1 + $0xe0] sm:$0xff]
    %v73 = vld [vmem:[%s1 + $0xe8] sm:$0xff]
    %v74 = vld [vmem:[%s1 + $0xf0] sm:$0xff]
    %v75 = vld [vmem:[%s1 + $0xf8] sm:$0xff]
    %vm76 = vcmask 130048
    %v78 = vsel %vm76, %v12, 0
    %v81 = vsel %vm76, %v13, 0
    %v84 = vsel %vm76, %v14, 0
    %v87 = vsel %vm76, %v15, 0
    %v90 = vsel %vm76, %v16, 0
    %v93 = vsel %vm76, %v17, 0
    %v96 = vsel %vm76, %v18, 0
    %v99 = vsel %vm76, %v19, 0
    %v102 = vsel %vm76, %v20, 0
    %v105 = vsel %vm76, %v21, 0
    %v108 = vsel %vm76, %v22, 0
    %v111 = vsel %vm76, %v23, 0
    %v114 = vsel %vm76, %v24, 0
    %v117 = vsel %vm76, %v25, 0
    %v120 = vsel %vm76, %v26, 0
    %v123 = vsel %vm76, %v27, 0
    %v126 = vsel %vm76, %v44, 0
    %v129 = vsel %vm76, %v45, 0
    %v132 = vsel %vm76, %v46, 0
    %v135 = vsel %vm76, %v47, 0
    %v138 = vsel %vm76, %v48, 0
    %v141 = vsel %vm76, %v49, 0
    %v144 = vsel %vm76, %v50, 0
    %v147 = vsel %vm76, %v51, 0
    %v150 = vsel %vm76, %v52, 0
    %v153 = vsel %vm76, %v53, 0
    %v156 = vsel %vm76, %v54, 0
    %v159 = vsel %vm76, %v55, 0
    %v162 = vsel %vm76, %v56, 0
    %v165 = vsel %vm76, %v57, 0
    %v168 = vsel %vm76, %v58, 0
    %v171 = vsel %vm76, %v59, 0
    %173 = vmatprep.subr.mxu0 0.0
    %174 = vmatpush1.xpose.msra.mxu0 %v126
    %175 = vmatprep.subr.mxu0 0.0
    %176 = vmatpush1.xpose.msra.mxu0 %v129
    %177 = vmatprep.subr.mxu0 0.0
    %178 = vmatpush1.xpose.msra.mxu0 %v132
    %179 = vmatprep.subr.mxu0 0.0
    %180 = vmatpush1.xpose.msra.mxu0 %v135
    %181 = vmatprep.subr.mxu0 0.0
    %182 = vmatpush1.xpose.msra.mxu0 %v138
    %183 = vmatprep.subr.mxu0 0.0
    %184 = vmatpush1.xpose.msra.mxu0 %v141
    %185 = vmatprep.subr.mxu0 0.0
    %186 = vmatpush1.xpose.msra.mxu0 %v144
    %187 = vmatprep.subr.mxu0 0.0
    %188 = vmatpush1.xpose.msra.mxu0 %v147
    %189 = vmatprep.subr.mxu0 0.0
    %190 = vmatpush1.xpose.msra.mxu0 %v150
    %191 = vmatprep.subr.mxu0 0.0
    %192 = vmatpush1.xpose.msra.mxu0 %v153
    %193 = vmatprep.subr.mxu0 0.0
    %194 = vmatpush1.xpose.msra.mxu0 %v156
    %195 = vmatprep.subr.mxu0 0.0
    %196 = vmatpush1.xpose.msra.mxu0 %v159
    %197 = vmatprep.subr.mxu0 0.0
    %198 = vmatpush1.xpose.msra.mxu0 %v162
    %199 = vmatprep.subr.mxu0 0.0
    %200 = vmatpush1.xpose.msra.mxu0 %v165
    %201 = vmatprep.subr.mxu0 0.0
    %202 = vmatpush1.xpose.msra.mxu0 %v168
    %203 = vmatprep.subr.mxu0 0.0
    %204 = vmatpush1.xpose.msra.mxu0 %v171
    %205 = vmatprep.subr.mxu0 0.0
    %206 = vmatpush1.xpose.msra.mxu0 0.0
    %207 = vmatprep.subr.mxu0 0.0
    %208 = vmatpush1.xpose.msra.mxu0 0.0
    %209 = vmatprep.subr.mxu0 0.0
    %210 = vmatpush1.xpose.msra.mxu0 0.0
    %211 = vmatprep.subr.mxu0 0.0
    %212 = vmatpush1.xpose.msra.mxu0 0.0
    %213 = vmatprep.subr.mxu0 0.0
    %214 = vmatpush1.xpose.msra.mxu0 0.0
    %215 = vmatprep.subr.mxu0 0.0
    %216 = vmatpush1.xpose.msra.mxu0 0.0
    %217 = vmatprep.subr.mxu0 0.0
    %218 = vmatpush1.xpose.msra.mxu0 0.0
    %219 = vmatprep.subr.mxu0 0.0
    %220 = vmatpush1.xpose.msra.mxu0 0.0
    %221 = vmatprep.subr.mxu0 0.0
    %222 = vmatpush1.xpose.msra.mxu0 0.0
    %223 = vmatprep.subr.mxu0 0.0
    %224 = vmatpush1.xpose.msra.mxu0 0.0
    %225 = vmatprep.subr.mxu0 0.0
    %226 = vmatpush1.xpose.msra.mxu0 0.0
    %227 = vmatprep.subr.mxu0 0.0
    %228 = vmatpush1.xpose.msra.mxu0 0.0
    %229 = vmatprep.subr.mxu0 0.0
    %230 = vmatpush1.xpose.msra.mxu0 0.0
    %231 = vmatprep.subr.mxu0 0.0
    %232 = vmatpush1.xpose.msra.mxu0 0.0
    %233 = vmatprep.subr.mxu0 0.0
    %234 = vmatpush1.xpose.msra.mxu0 0.0
    %235 = vmatprep.subr.mxu0 0.0
    %236 = vmatpush1.xpose.msra.mxu0 0.0
    %237 = vmatprep.mubr.f32.mxu0 0.0
    %238 = vmatmul.mubr.f32.gmra.mrb[0].mxu0 %v78
    %v239 = vpop.f32.mrb[0].mxu0
    %v240 = vadd.f32 0.0, %v239
    %v241 = vpop.f32.mrb[0].mxu0
    %242 = vmatprep.mubr.f32.mxu0 0.0
    %243 = vmatmul.mubr.f32.gmra.mrb[0].mxu0 %v81
    %v244 = vpop.f32.mrb[0].mxu0
    %v245 = vadd.f32 0.0, %v244
    %v246 = vpop.f32.mrb[0].mxu0
    %247 = vmatprep.mubr.f32.mxu0 0.0
    %248 = vmatmul.mubr.f32.gmra.mrb[0].mxu0 %v84
    %v249 = vpop.f32.mrb[0].mxu0
    %v250 = vadd.f32 0.0, %v249
    %v251 = vpop.f32.mrb[0].mxu0
    %252 = vmatprep.mubr.f32.mxu0 0.0
    %253 = vmatmul.mubr.f32.gmra.mrb[0].mxu0 %v87
    %v254 = vpop.f32.mrb[0].mxu0
    %v255 = vadd.f32 0.0, %v254
    %v256 = vpop.f32.mrb[0].mxu0
    %257 = vmatprep.mubr.f32.mxu0 0.0
    %258 = vmatmul.mubr.f32.gmra.mrb[0].mxu0 %v90
    %v259 = vpop.f32.mrb[0].mxu0
    %v260 = vadd.f32 0.0, %v259
    %v261 = vpop.f32.mrb[0].mxu0
    %262 = vmatprep.mubr.f32.mxu0 0.0
    %263 = vmatmul.mubr.f32.gmra.mrb[0].mxu0 %v93
    %v264 = vpop.f32.mrb[0].mxu0
    %v265 = vadd.f32 0.0, %v264
    %v266 = vpop.f32.mrb[0].mxu0
    %267 = vmatprep.mubr.f32.mxu0 0.0
    %268 = vmatmul.mubr.f32.gmra.mrb[0].mxu0 %v96
    %v269 = vpop.f32.mrb[0].mxu0
    %v270 = vadd.f32 0.0, %v269
    %v271 = vpop.f32.mrb[0].mxu0
    %272 = vmatprep.mubr.f32.mxu0 0.0
    %273 = vmatmul.mubr.f32.gmra.mrb[0].mxu0 %v99
    %v274 = vpop.f32.mrb[0].mxu0
    %v275 = vadd.f32 0.0, %v274
    %v276 = vpop.f32.mrb[0].mxu0
    %277 = vmatprep.mubr.f32.mxu0 0.0
    %278 = vmatmul.mubr.f32.gmra.mrb[0].mxu0 %v102
    %v279 = vpop.f32.mrb[0].mxu0
    %v280 = vadd.f32 0.0, %v279
    %v281 = vpop.f32.mrb[0].mxu0
    %282 = vmatprep.mubr.f32.mxu0 0.0
    %283 = vmatmul.mubr.f32.gmra.mrb[0].mxu0 %v105
    %v284 = vpop.f32.mrb[0].mxu0
    %v285 = vadd.f32 0.0, %v284
    %v286 = vpop.f32.mrb[0].mxu0
    %287 = vmatprep.mubr.f32.mxu0 0.0
    %288 = vmatmul.mubr.f32.gmra.mrb[0].mxu0 %v108
    %v289 = vpop.f32.mrb[0].mxu0
    %v290 = vadd.f32 0.0, %v289
    %v291 = vpop.f32.mrb[0].mxu0
    %292 = vmatprep.mubr.f32.mxu0 0.0
    %293 = vmatmul.mubr.f32.gmra.mrb[0].mxu0 %v111
    %v294 = vpop.f32.mrb[0].mxu0
    %v295 = vadd.f32 0.0, %v294
    %v296 = vpop.f32.mrb[0].mxu0
    %297 = vmatprep.mubr.f32.mxu0 0.0
    %298 = vmatmul.mubr.f32.gmra.mrb[0].mxu0 %v114
    %v299 = vpop.f32.mrb[0].mxu0
    %v300 = vadd.f32 0.0, %v299
    %v301 = vpop.f32.mrb[0].mxu0
    %302 = vmatprep.mubr.f32.mxu0 0.0
    %303 = vmatmul.mubr.f32.gmra.mrb[0].mxu0 %v117
    %v304 = vpop.f32.mrb[0].mxu0
    %v305 = vadd.f32 0.0, %v304
    %v306 = vpop.f32.mrb[0].mxu0
    %307 = vmatprep.mubr.f32.mxu0 0.0
    %308 = vmatmul.mubr.f32.gmra.mrb[0].mxu0 %v120
    %v309 = vpop.f32.mrb[0].mxu0
    %v310 = vadd.f32 0.0, %v309
    %v311 = vpop.f32.mrb[0].mxu0
    %312 = vmatprep.mubr.f32.mxu0 0.0
    %313 = vmatmul.mubr.f32.gmra.mrb[0].mxu0 %v123
    %v314 = vpop.f32.mrb[0].mxu0
    %v315 = vadd.f32 0.0, %v314
    %v316 = vpop.f32.mrb[0].mxu0
    %317 = vdwg.mxu0
    %v319 = vsel %vm76, %v28, 0
    %v322 = vsel %vm76, %v29, 0
    %v325 = vsel %vm76, %v30, 0
    %v328 = vsel %vm76, %v31, 0
    %v331 = vsel %vm76, %v32, 0
    %v334 = vsel %vm76, %v33, 0
    %v337 = vsel %vm76, %v34, 0
    %v340 = vsel %vm76, %v35, 0
    %v343 = vsel %vm76, %v36, 0
    %v346 = vsel %vm76, %v37, 0
    %v349 = vsel %vm76, %v38, 0
    %v352 = vsel %vm76, %v39, 0
    %v355 = vsel %vm76, %v40, 0
    %v358 = vsel %vm76, %v41, 0
    %v361 = vsel %vm76, %v42, 0
    %v364 = vsel %vm76, %v43, 0
    %v367 = vsel %vm76, %v60, 0
    %v370 = vsel %vm76, %v61, 0
    %v373 = vsel %vm76, %v62, 0
    %v376 = vsel %vm76, %v63, 0
    %v379 = vsel %vm76, %v64, 0
    %v382 = vsel %vm76, %v65, 0
    %v385 = vsel %vm76, %v66, 0
    %v388 = vsel %vm76, %v67, 0
    %v391 = vsel %vm76, %v68, 0
    %v394 = vsel %vm76, %v69, 0
    %v397 = vsel %vm76, %v70, 0
    %v400 = vsel %vm76, %v71, 0
    %v403 = vsel %vm76, %v72, 0
    %v406 = vsel %vm76, %v73, 0
    %v409 = vsel %vm76, %v74, 0
    %v412 = vsel %vm76, %v75, 0
    %414 = vmatprep.subr.mxu0 0.0
    %415 = vmatpush1.xpose.msra.mxu0 %v367
    %416 = vmatprep.subr.mxu0 0.0
    %417 = vmatpush1.xpose.msra.mxu0 %v370
    %418 = vmatprep.subr.mxu0 0.0
    %419 = vmatpush1.xpose.msra.mxu0 %v373
    %420 = vmatprep.subr.mxu0 0.0
    %421 = vmatpush1.xpose.msra.mxu0 %v376
    %422 = vmatprep.subr.mxu0 0.0
    %423 = vmatpush1.xpose.msra.mxu0 %v379
    %424 = vmatprep.subr.mxu0 0.0
    %425 = vmatpush1.xpose.msra.mxu0 %v382
    %426 = vmatprep.subr.mxu0 0.0
    %427 = vmatpush1.xpose.msra.mxu0 %v385
    %428 = vmatprep.subr.mxu0 0.0
    %429 = vmatpush1.xpose.msra.mxu0 %v388
    %430 = vmatprep.subr.mxu0 0.0
    %431 = vmatpush1.xpose.msra.mxu0 %v391
    %432 = vmatprep.subr.mxu0 0.0
    %433 = vmatpush1.xpose.msra.mxu0 %v394
    %434 = vmatprep.subr.mxu0 0.0
    %435 = vmatpush1.xpose.msra.mxu0 %v397
    %436 = vmatprep.subr.mxu0 0.0
    %437 = vmatpush1.xpose.msra.mxu0 %v400
    %438 = vmatprep.subr.mxu0 0.0
    %439 = vmatpush1.xpose.msra.mxu0 %v403
    %440 = vmatprep.subr.mxu0 0.0
    %441 = vmatpush1.xpose.msra.mxu0 %v406
    %442 = vmatprep.subr.mxu0 0.0
    %443 = vmatpush1.xpose.msra.mxu0 %v409
    %444 = vmatprep.subr.mxu0 0.0
    %445 = vmatpush1.xpose.msra.mxu0 %v412
    %446 = vmatprep.subr.mxu0 0.0
    %447 = vmatpush1.xpose.msra.mxu0 0.0
    %448 = vmatprep.subr.mxu0 0.0
    %449 = vmatpush1.xpose.msra.mxu0 0.0
    %450 = vmatprep.subr.mxu0 0.0
    %451 = vmatpush1.xpose.msra.mxu0 0.0
    %452 = vmatprep.subr.mxu0 0.0
    %453 = vmatpush1.xpose.msra.mxu0 0.0
    %454 = vmatprep.subr.mxu0 0.0
    %455 = vmatpush1.xpose.msra.mxu0 0.0
    %456 = vmatprep.subr.mxu0 0.0
    %457 = vmatpush1.xpose.msra.mxu0 0.0
    %458 = vmatprep.subr.mxu0 0.0
    %459 = vmatpush1.xpose.msra.mxu0 0.0
    %460 = vmatprep.subr.mxu0 0.0
    %461 = vmatpush1.xpose.msra.mxu0 0.0
    %462 = vmatprep.subr.mxu0 0.0
    %463 = vmatpush1.xpose.msra.mxu0 0.0
    %464 = vmatprep.subr.mxu0 0.0
    %465 = vmatpush1.xpose.msra.mxu0 0.0
    %466 = vmatprep.subr.mxu0 0.0
    %467 = vmatpush1.xpose.msra.mxu0 0.0
    %468 = vmatprep.subr.mxu0 0.0
    %469 = vmatpush1.xpose.msra.mxu0 0.0
    %470 = vmatprep.subr.mxu0 0.0
    %471 = vmatpush1.xpose.msra.mxu0 0.0
    %472 = vmatprep.subr.mxu0 0.0
    %473 = vmatpush1.xpose.msra.mxu0 0.0
    %474 = vmatprep.subr.mxu0 0.0
    %475 = vmatpush1.xpose.msra.mxu0 0.0
    %476 = vmatprep.subr.mxu0 0.0
    %477 = vmatpush1.xpose.msra.mxu0 0.0
    %478 = vmatprep.mubr.f32.mxu0 0.0
    %479 = vmatmul.mubr.f32.gmra.mrb[0].mxu0 %v319
    %v480 = vpop.f32.mrb[0].mxu0
    %v481 = vadd.f32 0.0, %v480
    %v482 = vpop.f32.mrb[0].mxu0
    %483 = vmatprep.mubr.f32.mxu0 0.0
    %484 = vmatmul.mubr.f32.gmra.mrb[0].mxu0 %v322
    %v485 = vpop.f32.mrb[0].mxu0
    %v486 = vadd.f32 0.0, %v485
    %v487 = vpop.f32.mrb[0].mxu0
    %488 = vmatprep.mubr.f32.mxu0 0.0
    %489 = vmatmul.mubr.f32.gmra.mrb[0].mxu0 %v325
    %v490 = vpop.f32.mrb[0].mxu0
    %v491 = vadd.f32 0.0, %v490
    %v492 = vpop.f32.mrb[0].mxu0
    %493 = vmatprep.mubr.f32.mxu0 0.0
    %494 = vmatmul.mubr.f32.gmra.mrb[0].mxu0 %v328
    %v495 = vpop.f32.mrb[0].mxu0
    %v496 = vadd.f32 0.0, %v495
    %v497 = vpop.f32.mrb[0].mxu0
    %498 = vmatprep.mubr.f32.mxu0 0.0
    %499 = vmatmul.mubr.f32.gmra.mrb[0].mxu0 %v331
    %v500 = vpop.f32.mrb[0].mxu0
    %v501 = vadd.f32 0.0, %v500
    %v502 = vpop.f32.mrb[0].mxu0
    %503 = vmatprep.mubr.f32.mxu0 0.0
    %504 = vmatmul.mubr.f32.gmra.mrb[0].mxu0 %v334
    %v505 = vpop.f32.mrb[0].mxu0
    %v506 = vadd.f32 0.0, %v505
    %v507 = vpop.f32.mrb[0].mxu0
    %508 = vmatprep.mubr.f32.mxu0 0.0
    %509 = vmatmul.mubr.f32.gmra.mrb[0].mxu0 %v337
    %v510 = vpop.f32.mrb[0].mxu0
    %v511 = vadd.f32 0.0, %v510
    %v512 = vpop.f32.mrb[0].mxu0
    %513 = vmatprep.mubr.f32.mxu0 0.0
    %514 = vmatmul.mubr.f32.gmra.mrb[0].mxu0 %v340
    %v515 = vpop.f32.mrb[0].mxu0
    %v516 = vadd.f32 0.0, %v515
    %v517 = vpop.f32.mrb[0].mxu0
    %518 = vmatprep.mubr.f32.mxu0 0.0
    %519 = vmatmul.mubr.f32.gmra.mrb[0].mxu0 %v343
    %v520 = vpop.f32.mrb[0].mxu0
    %v521 = vadd.f32 0.0, %v520
    %v522 = vpop.f32.mrb[0].mxu0
    %523 = vmatprep.mubr.f32.mxu0 0.0
    %524 = vmatmul.mubr.f32.gmra.mrb[0].mxu0 %v346
    %v525 = vpop.f32.mrb[0].mxu0
    %v526 = vadd.f32 0.0, %v525
    %v527 = vpop.f32.mrb[0].mxu0
    %528 = vmatprep.mubr.f32.mxu0 0.0
    %529 = vmatmul.mubr.f32.gmra.mrb[0].mxu0 %v349
    %v530 = vpop.f32.mrb[0].mxu0
    %v531 = vadd.f32 0.0, %v530
    %v532 = vpop.f32.mrb[0].mxu0
    %533 = vmatprep.mubr.f32.mxu0 0.0
    %534 = vmatmul.mubr.f32.gmra.mrb[0].mxu0 %v352
    %v535 = vpop.f32.mrb[0].mxu0
    %v536 = vadd.f32 0.0, %v535
    %v537 = vpop.f32.mrb[0].mxu0
    %538 = vmatprep.mubr.f32.mxu0 0.0
    %539 = vmatmul.mubr.f32.gmra.mrb[0].mxu0 %v355
    %v540 = vpop.f32.mrb[0].mxu0
    %v541 = vadd.f32 0.0, %v540
    %v542 = vpop.f32.mrb[0].mxu0
    %543 = vmatprep.mubr.f32.mxu0 0.0
    %544 = vmatmul.mubr.f32.gmra.mrb[0].mxu0 %v358
    %v545 = vpop.f32.mrb[0].mxu0
    %v546 = vadd.f32 0.0, %v545
    %v547 = vpop.f32.mrb[0].mxu0
    %548 = vmatprep.mubr.f32.mxu0 0.0
    %549 = vmatmul.mubr.f32.gmra.mrb[0].mxu0 %v361
    %v550 = vpop.f32.mrb[0].mxu0
    %v551 = vadd.f32 0.0, %v550
    %v552 = vpop.f32.mrb[0].mxu0
    %553 = vmatprep.mubr.f32.mxu0 0.0
    %554 = vmatmul.mubr.f32.gmra.mrb[0].mxu0 %v364
    %v555 = vpop.f32.mrb[0].mxu0
    %v556 = vadd.f32 0.0, %v555
    %v557 = vpop.f32.mrb[0].mxu0
    %558 = vdwg.mxu0
    %v559 = vlaneseq
    %v560 = vshrl.u32 %v559, 7
    %v561 = vadd.s32 %v560, 8
    %v562 = vadd.s32 %v560, 16
    %v563 = vadd.s32 %v560, 24
    %v564 = vadd.s32 %v560, 32
    %v565 = vadd.s32 %v560, 40
    %v566 = vadd.s32 %v560, 48
    %v567 = vadd.s32 %v560, 56
    %v568 = vadd.s32 %v560, 64
    %v569 = vadd.s32 %v560, 72
    %v570 = vadd.s32 %v560, 80
    %v571 = vadd.s32 %v560, 88
    %v572 = vadd.s32 %v560, 96
    %v573 = vadd.s32 %v560, 104
    %v574 = vadd.s32 %v560, 112
    %v575 = vadd.s32 %v560, 120
    %576 = vrot.lane.b32.xlu0 %v240, 127
    %v577 = vpop.permute.xlu0 %576
    %578 = vrot.lane.b32.xlu0 %v245, 127
    %v579 = vpop.permute.xlu0 %578
    %580 = vrot.lane.b32.xlu0 %v250, 127
    %v581 = vpop.permute.xlu0 %580
    %582 = vrot.lane.b32.xlu0 %v255, 127
    %v583 = vpop.permute.xlu0 %582
    %584 = vrot.lane.b32.xlu0 %v260, 127
    %v585 = vpop.permute.xlu0 %584
    %586 = vrot.lane.b32.xlu0 %v265, 127
    %v587 = vpop.permute.xlu0 %586
    %588 = vrot.lane.b32.xlu0 %v270, 127
    %v589 = vpop.permute.xlu0 %588
    %590 = vrot.lane.b32.xlu0 %v275, 127
    %v591 = vpop.permute.xlu0 %590
    %592 = vrot.lane.b32.xlu0 %v280, 127
    %v593 = vpop.permute.xlu0 %592
    %594 = vrot.lane.b32.xlu0 %v285, 127
    %v595 = vpop.permute.xlu0 %594
    %596 = vrot.lane.b32.xlu0 %v290, 127
    %v597 = vpop.permute.xlu0 %596
    %598 = vrot.lane.b32.xlu0 %v295, 127
    %v599 = vpop.permute.xlu0 %598
    %600 = vrot.lane.b32.xlu0 %v300, 127
    %v601 = vpop.permute.xlu0 %600
    %602 = vrot.lane.b32.xlu0 %v305, 127
    %v603 = vpop.permute.xlu0 %602
    %604 = vrot.lane.b32.xlu0 %v310, 127
    %v605 = vpop.permute.xlu0 %604
    %606 = vrot.lane.b32.xlu0 %v315, 127
    %v607 = vpop.permute.xlu0 %606
    %608 = vrot.lane.b32.xlu0 %v481, 127
    %v609 = vpop.permute.xlu0 %608
    %610 = vrot.lane.b32.xlu0 %v486, 127
    %v611 = vpop.permute.xlu0 %610
    %612 = vrot.lane.b32.xlu0 %v491, 127
    %v613 = vpop.permute.xlu0 %612
    %614 = vrot.lane.b32.xlu0 %v496, 127
    %v615 = vpop.permute.xlu0 %614
    %616 = vrot.lane.b32.xlu0 %v501, 127
    %v617 = vpop.permute.xlu0 %616
    %618 = vrot.lane.b32.xlu0 %v506, 127
    %v619 = vpop.permute.xlu0 %618
    %620 = vrot.lane.b32.xlu0 %v511, 127
    %v621 = vpop.permute.xlu0 %620
    %622 = vrot.lane.b32.xlu0 %v516, 127
    %v623 = vpop.permute.xlu0 %622
    %624 = vrot.lane.b32.xlu0 %v521, 127
    %v625 = vpop.permute.xlu0 %624
    %626 = vrot.lane.b32.xlu0 %v526, 127
    %v627 = vpop.permute.xlu0 %626
    %628 = vrot.lane.b32.xlu0 %v531, 127
    %v629 = vpop.permute.xlu0 %628
    %630 = vrot.lane.b32.xlu0 %v536, 127
    %v631 = vpop.permute.xlu0 %630
    %632 = vrot.lane.b32.xlu0 %v541, 127
    %v633 = vpop.permute.xlu0 %632
    %634 = vrot.lane.b32.xlu0 %v546, 127
    %v635 = vpop.permute.xlu0 %634
    %636 = vrot.lane.b32.xlu0 %v551, 127
    %v637 = vpop.permute.xlu0 %636
    %638 = vrot.lane.b32.xlu0 %v556, 127
    %v639 = vpop.permute.xlu0 %638
    %v640 = vand.u32 %v560, 1
    %v641 = vand.u32 %v561, 1
    %v642 = vand.u32 %v562, 1
    %v643 = vand.u32 %v563, 1
    %v644 = vand.u32 %v564, 1
    %v645 = vand.u32 %v565, 1
    %v646 = vand.u32 %v566, 1
    %v647 = vand.u32 %v567, 1
    %v648 = vand.u32 %v568, 1
    %v649 = vand.u32 %v569, 1
    %v650 = vand.u32 %v570, 1
    %v651 = vand.u32 %v571, 1
    %v652 = vand.u32 %v572, 1
    %v653 = vand.u32 %v573, 1
    %v654 = vand.u32 %v574, 1
    %v655 = vand.u32 %v575, 1
    %vm656 = vcmp.eq.s32.totalorder %v640, 1
    %vm657 = vcmp.eq.s32.totalorder %v641, 1
    %vm658 = vcmp.eq.s32.totalorder %v642, 1
    %vm659 = vcmp.eq.s32.totalorder %v643, 1
    %vm660 = vcmp.eq.s32.totalorder %v644, 1
    %vm661 = vcmp.eq.s32.totalorder %v645, 1
    %vm662 = vcmp.eq.s32.totalorder %v646, 1
    %vm663 = vcmp.eq.s32.totalorder %v647, 1
    %vm664 = vcmp.eq.s32.totalorder %v648, 1
    %vm665 = vcmp.eq.s32.totalorder %v649, 1
    %vm666 = vcmp.eq.s32.totalorder %v650, 1
    %vm667 = vcmp.eq.s32.totalorder %v651, 1
    %vm668 = vcmp.eq.s32.totalorder %v652, 1
    %vm669 = vcmp.eq.s32.totalorder %v653, 1
    %vm670 = vcmp.eq.s32.totalorder %v654, 1
    %vm671 = vcmp.eq.s32.totalorder %v655, 1
    %v672 = vsel %vm656, 1, 0
    %v673 = vsel %vm657, 1, 0
    %v674 = vsel %vm658, 1, 0
    %v675 = vsel %vm659, 1, 0
    %v676 = vsel %vm660, 1, 0
    %v677 = vsel %vm661, 1, 0
    %v678 = vsel %vm662, 1, 0
    %v679 = vsel %vm663, 1, 0
    %v680 = vsel %vm664, 1, 0
    %v681 = vsel %vm665, 1, 0
    %v682 = vsel %vm666, 1, 0
    %v683 = vsel %vm667, 1, 0
    %v684 = vsel %vm668, 1, 0
    %v685 = vsel %vm669, 1, 0
    %v686 = vsel %vm670, 1, 0
    %v687 = vsel %vm671, 1, 0
    %vm688 = vcmp.eq.s32.totalorder %v672, 1
    %vm689 = vcmp.eq.s32.totalorder %v673, 1
    %vm690 = vcmp.eq.s32.totalorder %v674, 1
    %vm691 = vcmp.eq.s32.totalorder %v675, 1
    %vm692 = vcmp.eq.s32.totalorder %v676, 1
    %vm693 = vcmp.eq.s32.totalorder %v677, 1
    %vm694 = vcmp.eq.s32.totalorder %v678, 1
    %vm695 = vcmp.eq.s32.totalorder %v679, 1
    %vm696 = vcmp.eq.s32.totalorder %v680, 1
    %vm697 = vcmp.eq.s32.totalorder %v681, 1
    %vm698 = vcmp.eq.s32.totalorder %v682, 1
    %vm699 = vcmp.eq.s32.totalorder %v683, 1
    %vm700 = vcmp.eq.s32.totalorder %v684, 1
    %vm701 = vcmp.eq.s32.totalorder %v685, 1
    %vm702 = vcmp.eq.s32.totalorder %v686, 1
    %vm703 = vcmp.eq.s32.totalorder %v687, 1
    %v704 = vsel %vm688, %v577, %v240
    %v705 = vsel %vm689, %v579, %v245
    %v706 = vsel %vm690, %v581, %v250
    %v707 = vsel %vm691, %v583, %v255
    %v708 = vsel %vm692, %v585, %v260
    %v709 = vsel %vm693, %v587, %v265
    %v710 = vsel %vm694, %v589, %v270
    %v711 = vsel %vm695, %v591, %v275
    %v712 = vsel %vm696, %v593, %v280
    %v713 = vsel %vm697, %v595, %v285
    %v714 = vsel %vm698, %v597, %v290
    %v715 = vsel %vm699, %v599, %v295
    %v716 = vsel %vm700, %v601, %v300
    %v717 = vsel %vm701, %v603, %v305
    %v718 = vsel %vm702, %v605, %v310
    %v719 = vsel %vm703, %v607, %v315
    %v720 = vsel %vm688, %v609, %v481
    %v721 = vsel %vm689, %v611, %v486
    %v722 = vsel %vm690, %v613, %v491
    %v723 = vsel %vm691, %v615, %v496
    %v724 = vsel %vm692, %v617, %v501
    %v725 = vsel %vm693, %v619, %v506
    %v726 = vsel %vm694, %v621, %v511
    %v727 = vsel %vm695, %v623, %v516
    %v728 = vsel %vm696, %v625, %v521
    %v729 = vsel %vm697, %v627, %v526
    %v730 = vsel %vm698, %v629, %v531
    %v731 = vsel %vm699, %v631, %v536
    %v732 = vsel %vm700, %v633, %v541
    %v733 = vsel %vm701, %v635, %v546
    %v734 = vsel %vm702, %v637, %v551
    %v735 = vsel %vm703, %v639, %v556
    %736 = vrot.lane.b32.xlu0 %v704, 126
    %v737 = vpop.permute.xlu0 %736
    %738 = vrot.lane.b32.xlu0 %v705, 126
    %v739 = vpop.permute.xlu0 %738
    %740 = vrot.lane.b32.xlu0 %v706, 126
    %v741 = vpop.permute.xlu0 %740
    %742 = vrot.lane.b32.xlu0 %v707, 126
    %v743 = vpop.permute.xlu0 %742
    %744 = vrot.lane.b32.xlu0 %v708, 126
    %v745 = vpop.permute.xlu0 %744
    %746 = vrot.lane.b32.xlu0 %v709, 126
    %v747 = vpop.permute.xlu0 %746
    %748 = vrot.lane.b32.xlu0 %v710, 126
    %v749 = vpop.permute.xlu0 %748
    %750 = vrot.lane.b32.xlu0 %v711, 126
    %v751 = vpop.permute.xlu0 %750
    %752 = vrot.lane.b32.xlu0 %v712, 126
    %v753 = vpop.permute.xlu0 %752
    %754 = vrot.lane.b32.xlu0 %v713, 126
    %v755 = vpop.permute.xlu0 %754
    %756 = vrot.lane.b32.xlu0 %v714, 126
    %v757 = vpop.permute.xlu0 %756
    %758 = vrot.lane.b32.xlu0 %v715, 126
    %v759 = vpop.permute.xlu0 %758
    %760 = vrot.lane.b32.xlu0 %v716, 126
    %v761 = vpop.permute.xlu0 %760
    %762 = vrot.lane.b32.xlu0 %v717, 126
    %v763 = vpop.permute.xlu0 %762
    %764 = vrot.lane.b32.xlu0 %v718, 126
    %v765 = vpop.permute.xlu0 %764
    %766 = vrot.lane.b32.xlu0 %v719, 126
    %v767 = vpop.permute.xlu0 %766
    %768 = vrot.lane.b32.xlu0 %v720, 126
    %v769 = vpop.permute.xlu0 %768
    %770 = vrot.lane.b32.xlu0 %v721, 126
    %v771 = vpop.permute.xlu0 %770
    %772 = vrot.lane.b32.xlu0 %v722, 126
    %v773 = vpop.permute.xlu0 %772
    %774 = vrot.lane.b32.xlu0 %v723, 126
    %v775 = vpop.permute.xlu0 %774
    %776 = vrot.lane.b32.xlu0 %v724, 126
    %v777 = vpop.permute.xlu0 %776
    %778 = vrot.lane.b32.xlu0 %v725, 126
    %v779 = vpop.permute.xlu0 %778
    %780 = vrot.lane.b32.xlu0 %v726, 126
    %v781 = vpop.permute.xlu0 %780
    %782 = vrot.lane.b32.xlu0 %v727, 126
    %v783 = vpop.permute.xlu0 %782
    %784 = vrot.lane.b32.xlu0 %v728, 126
    %v785 = vpop.permute.xlu0 %784
    %786 = vrot.lane.b32.xlu0 %v729, 126
    %v787 = vpop.permute.xlu0 %786
    %788 = vrot.lane.b32.xlu0 %v730, 126
    %v789 = vpop.permute.xlu0 %788
    %790 = vrot.lane.b32.xlu0 %v731, 126
    %v791 = vpop.permute.xlu0 %790
    %792 = vrot.lane.b32.xlu0 %v732, 126
    %v793 = vpop.permute.xlu0 %792
    %794 = vrot.lane.b32.xlu0 %v733, 126
    %v795 = vpop.permute.xlu0 %794
    %796 = vrot.lane.b32.xlu0 %v734, 126
    %v797 = vpop.permute.xlu0 %796
    %798 = vrot.lane.b32.xlu0 %v735, 126
    %v799 = vpop.permute.xlu0 %798
    %v800 = vshra.s32 %v560, 1
    %v801 = vshra.s32 %v561, 1
    %v802 = vshra.s32 %v562, 1
    %v803 = vshra.s32 %v563, 1
    %v804 = vshra.s32 %v564, 1
    %v805 = vshra.s32 %v565, 1
    %v806 = vshra.s32 %v566, 1
    %v807 = vshra.s32 %v567, 1
    %v808 = vshra.s32 %v568, 1
    %v809 = vshra.s32 %v569, 1
    %v810 = vshra.s32 %v570, 1
    %v811 = vshra.s32 %v571, 1
    %v812 = vshra.s32 %v572, 1
    %v813 = vshra.s32 %v573, 1
    %v814 = vshra.s32 %v574, 1
    %v815 = vshra.s32 %v575, 1
    %v816 = vand.u32 %v800, 1
    %v817 = vand.u32 %v801, 1
    %v818 = vand.u32 %v802, 1
    %v819 = vand.u32 %v803, 1
    %v820 = vand.u32 %v804, 1
    %v821 = vand.u32 %v805, 1
    %v822 = vand.u32 %v806, 1
    %v823 = vand.u32 %v807, 1
    %v824 = vand.u32 %v808, 1
    %v825 = vand.u32 %v809, 1
    %v826 = vand.u32 %v810, 1
    %v827 = vand.u32 %v811, 1
    %v828 = vand.u32 %v812, 1
    %v829 = vand.u32 %v813, 1
    %v830 = vand.u32 %v814, 1
    %v831 = vand.u32 %v815, 1
    %vm832 = vcmp.eq.s32.totalorder %v816, 1
    %vm833 = vcmp.eq.s32.totalorder %v817, 1
    %vm834 = vcmp.eq.s32.totalorder %v818, 1
    %vm835 = vcmp.eq.s32.totalorder %v819, 1
    %vm836 = vcmp.eq.s32.totalorder %v820, 1
    %vm837 = vcmp.eq.s32.totalorder %v821, 1
    %vm838 = vcmp.eq.s32.totalorder %v822, 1
    %vm839 = vcmp.eq.s32.totalorder %v823, 1
    %vm840 = vcmp.eq.s32.totalorder %v824, 1
    %vm841 = vcmp.eq.s32.totalorder %v825, 1
    %vm842 = vcmp.eq.s32.totalorder %v826, 1
    %vm843 = vcmp.eq.s32.totalorder %v827, 1
    %vm844 = vcmp.eq.s32.totalorder %v828, 1
    %vm845 = vcmp.eq.s32.totalorder %v829, 1
    %vm846 = vcmp.eq.s32.totalorder %v830, 1
    %vm847 = vcmp.eq.s32.totalorder %v831, 1
    %v848 = vsel %vm832, 1, 0
    %v849 = vsel %vm833, 1, 0
    %v850 = vsel %vm834, 1, 0
    %v851 = vsel %vm835, 1, 0
    %v852 = vsel %vm836, 1, 0
    %v853 = vsel %vm837, 1, 0
    %v854 = vsel %vm838, 1, 0
    %v855 = vsel %vm839, 1, 0
    %v856 = vsel %vm840, 1, 0
    %v857 = vsel %vm841, 1, 0
    %v858 = vsel %vm842, 1, 0
    %v859 = vsel %vm843, 1, 0
    %v860 = vsel %vm844, 1, 0
    %v861 = vsel %vm845, 1, 0
    %v862 = vsel %vm846, 1, 0
    %v863 = vsel %vm847, 1, 0
    %vm864 = vcmp.eq.s32.totalorder %v848, 1
    %vm865 = vcmp.eq.s32.totalorder %v849, 1
    %vm866 = vcmp.eq.s32.totalorder %v850, 1
    %vm867 = vcmp.eq.s32.totalorder %v851, 1
    %vm868 = vcmp.eq.s32.totalorder %v852, 1
    %vm869 = vcmp.eq.s32.totalorder %v853, 1
    %vm870 = vcmp.eq.s32.totalorder %v854, 1
    %vm871 = vcmp.eq.s32.totalorder %v855, 1
    %vm872 = vcmp.eq.s32.totalorder %v856, 1
    %vm873 = vcmp.eq.s32.totalorder %v857, 1
    %vm874 = vcmp.eq.s32.totalorder %v858, 1
    %vm875 = vcmp.eq.s32.totalorder %v859, 1
    %vm876 = vcmp.eq.s32.totalorder %v860, 1
    %vm877 = vcmp.eq.s32.totalorder %v861, 1
    %vm878 = vcmp.eq.s32.totalorder %v862, 1
    %vm879 = vcmp.eq.s32.totalorder %v863, 1
    %v880 = vsel %vm864, %v737, %v704
    %v881 = vsel %vm865, %v739, %v705
    %v882 = vsel %vm866, %v741, %v706
    %v883 = vsel %vm867, %v743, %v707
    %v884 = vsel %vm868, %v745, %v708
    %v885 = vsel %vm869, %v747, %v709
    %v886 = vsel %vm870, %v749, %v710
    %v887 = vsel %vm871, %v751, %v711
    %v888 = vsel %vm872, %v753, %v712
    %v889 = vsel %vm873, %v755, %v713
    %v890 = vsel %vm874, %v757, %v714
    %v891 = vsel %vm875, %v759, %v715
    %v892 = vsel %vm876, %v761, %v716
    %v893 = vsel %vm877, %v763, %v717
    %v894 = vsel %vm878, %v765, %v718
    %v895 = vsel %vm879, %v767, %v719
    %v896 = vsel %vm864, %v769, %v720
    %v897 = vsel %vm865, %v771, %v721
    %v898 = vsel %vm866, %v773, %v722
    %v899 = vsel %vm867, %v775, %v723
    %v900 = vsel %vm868, %v777, %v724
    %v901 = vsel %vm869, %v779, %v725
    %v902 = vsel %vm870, %v781, %v726
    %v903 = vsel %vm871, %v783, %v727
    %v904 = vsel %vm872, %v785, %v728
    %v905 = vsel %vm873, %v787, %v729
    %v906 = vsel %vm874, %v789, %v730
    %v907 = vsel %vm875, %v791, %v731
    %v908 = vsel %vm876, %v793, %v732
    %v909 = vsel %vm877, %v795, %v733
    %v910 = vsel %vm878, %v797, %v734
    %v911 = vsel %vm879, %v799, %v735
    %912 = vrot.lane.b32.xlu0 %v880, 124
    %v913 = vpop.permute.xlu0 %912
    %914 = vrot.lane.b32.xlu0 %v881, 124
    %v915 = vpop.permute.xlu0 %914
    %916 = vrot.lane.b32.xlu0 %v882, 124
    %v917 = vpop.permute.xlu0 %916
    %918 = vrot.lane.b32.xlu0 %v883, 124
    %v919 = vpop.permute.xlu0 %918
    %920 = vrot.lane.b32.xlu0 %v884, 124
    %v921 = vpop.permute.xlu0 %920
    %922 = vrot.lane.b32.xlu0 %v885, 124
    %v923 = vpop.permute.xlu0 %922
    %924 = vrot.lane.b32.xlu0 %v886, 124
    %v925 = vpop.permute.xlu0 %924
    %926 = vrot.lane.b32.xlu0 %v887, 124
    %v927 = vpop.permute.xlu0 %926
    %928 = vrot.lane.b32.xlu0 %v888, 124
    %v929 = vpop.permute.xlu0 %928
    %930 = vrot.lane.b32.xlu0 %v889, 124
    %v931 = vpop.permute.xlu0 %930
    %932 = vrot.lane.b32.xlu0 %v890, 124
    %v933 = vpop.permute.xlu0 %932
    %934 = vrot.lane.b32.xlu0 %v891, 124
    %v935 = vpop.permute.xlu0 %934
    %936 = vrot.lane.b32.xlu0 %v892, 124
    %v937 = vpop.permute.xlu0 %936
    %938 = vrot.lane.b32.xlu0 %v893, 124
    %v939 = vpop.permute.xlu0 %938
    %940 = vrot.lane.b32.xlu0 %v894, 124
    %v941 = vpop.permute.xlu0 %940
    %942 = vrot.lane.b32.xlu0 %v895, 124
    %v943 = vpop.permute.xlu0 %942
    %944 = vrot.lane.b32.xlu0 %v896, 124
    %v945 = vpop.permute.xlu0 %944
    %946 = vrot.lane.b32.xlu0 %v897, 124
    %v947 = vpop.permute.xlu0 %946
    %948 = vrot.lane.b32.xlu0 %v898, 124
    %v949 = vpop.permute.xlu0 %948
    %950 = vrot.lane.b32.xlu0 %v899, 124
    %v951 = vpop.permute.xlu0 %950
    %952 = vrot.lane.b32.xlu0 %v900, 124
    %v953 = vpop.permute.xlu0 %952
    %954 = vrot.lane.b32.xlu0 %v901, 124
    %v955 = vpop.permute.xlu0 %954
    %956 = vrot.lane.b32.xlu0 %v902, 124
    %v957 = vpop.permute.xlu0 %956
    %958 = vrot.lane.b32.xlu0 %v903, 124
    %v959 = vpop.permute.xlu0 %958
    %960 = vrot.lane.b32.xlu0 %v904, 124
    %v961 = vpop.permute.xlu0 %960
    %962 = vrot.lane.b32.xlu0 %v905, 124
    %v963 = vpop.permute.xlu0 %962
    %964 = vrot.lane.b32.xlu0 %v906, 124
    %v965 = vpop.permute.xlu0 %964
    %966 = vrot.lane.b32.xlu0 %v907, 124
    %v967 = vpop.permute.xlu0 %966
    %968 = vrot.lane.b32.xlu0 %v908, 124
    %v969 = vpop.permute.xlu0 %968
    %970 = vrot.lane.b32.xlu0 %v909, 124
    %v971 = vpop.permute.xlu0 %970
    %972 = vrot.lane.b32.xlu0 %v910, 124
    %v973 = vpop.permute.xlu0 %972
    %974 = vrot.lane.b32.xlu0 %v911, 124
    %v975 = vpop.permute.xlu0 %974
    %v976 = vshra.s32 %v560, 2
    %v977 = vshra.s32 %v561, 2
    %v978 = vshra.s32 %v562, 2
    %v979 = vshra.s32 %v563, 2
    %v980 = vshra.s32 %v564, 2
    %v981 = vshra.s32 %v565, 2
    %v982 = vshra.s32 %v566, 2
    %v983 = vshra.s32 %v567, 2
    %v984 = vshra.s32 %v568, 2
    %v985 = vshra.s32 %v569, 2
    %v986 = vshra.s32 %v570, 2
    %v987 = vshra.s32 %v571, 2
    %v988 = vshra.s32 %v572, 2
    %v989 = vshra.s32 %v573, 2
    %v990 = vshra.s32 %v574, 2
    %v991 = vshra.s32 %v575, 2
    %v992 = vand.u32 %v976, 1
    %v993 = vand.u32 %v977, 1
    %v994 = vand.u32 %v978, 1
    %v995 = vand.u32 %v979, 1
    %v996 = vand.u32 %v980, 1
    %v997 = vand.u32 %v981, 1
    %v998 = vand.u32 %v982, 1
    %v999 = vand.u32 %v983, 1
    %v1000 = vand.u32 %v984, 1
    %v1001 = vand.u32 %v985, 1
    %v1002 = vand.u32 %v986, 1
    %v1003 = vand.u32 %v987, 1
    %v1004 = vand.u32 %v988, 1
    %v1005 = vand.u32 %v989, 1
    %v1006 = vand.u32 %v990, 1
    %v1007 = vand.u32 %v991, 1
    %vm1008 = vcmp.eq.s32.totalorder %v992, 1
    %vm1009 = vcmp.eq.s32.totalorder %v993, 1
    %vm1010 = vcmp.eq.s32.totalorder %v994, 1
    %vm1011 = vcmp.eq.s32.totalorder %v995, 1
    %vm1012 = vcmp.eq.s32.totalorder %v996, 1
    %vm1013 = vcmp.eq.s32.totalorder %v997, 1
    %vm1014 = vcmp.eq.s32.totalorder %v998, 1
    %vm1015 = vcmp.eq.s32.totalorder %v999, 1
    %vm1016 = vcmp.eq.s32.totalorder %v1000, 1
    %vm1017 = vcmp.eq.s32.totalorder %v1001, 1
    %vm1018 = vcmp.eq.s32.totalorder %v1002, 1
    %vm1019 = vcmp.eq.s32.totalorder %v1003, 1
    %vm1020 = vcmp.eq.s32.totalorder %v1004, 1
    %vm1021 = vcmp.eq.s32.totalorder %v1005, 1
    %vm1022 = vcmp.eq.s32.totalorder %v1006, 1
    %vm1023 = vcmp.eq.s32.totalorder %v1007, 1
    %v1024 = vsel %vm1008, 1, 0
    %v1025 = vsel %vm1009, 1, 0
    %v1026 = vsel %vm1010, 1, 0
    %v1027 = vsel %vm1011, 1, 0
    %v1028 = vsel %vm1012, 1, 0
    %v1029 = vsel %vm1013, 1, 0
    %v1030 = vsel %vm1014, 1, 0
    %v1031 = vsel %vm1015, 1, 0
    %v1032 = vsel %vm1016, 1, 0
    %v1033 = vsel %vm1017, 1, 0
    %v1034 = vsel %vm1018, 1, 0
    %v1035 = vsel %vm1019, 1, 0
    %v1036 = vsel %vm1020, 1, 0
    %v1037 = vsel %vm1021, 1, 0
    %v1038 = vsel %vm1022, 1, 0
    %v1039 = vsel %vm1023, 1, 0
    %vm1040 = vcmp.eq.s32.totalorder %v1024, 1
    %vm1041 = vcmp.eq.s32.totalorder %v1025, 1
    %vm1042 = vcmp.eq.s32.totalorder %v1026, 1
    %vm1043 = vcmp.eq.s32.totalorder %v1027, 1
    %vm1044 = vcmp.eq.s32.totalorder %v1028, 1
    %vm1045 = vcmp.eq.s32.totalorder %v1029, 1
    %vm1046 = vcmp.eq.s32.totalorder %v1030, 1
    %vm1047 = vcmp.eq.s32.totalorder %v1031, 1
    %vm1048 = vcmp.eq.s32.totalorder %v1032, 1
    %vm1049 = vcmp.eq.s32.totalorder %v1033, 1
    %vm1050 = vcmp.eq.s32.totalorder %v1034, 1
    %vm1051 = vcmp.eq.s32.totalorder %v1035, 1
    %vm1052 = vcmp.eq.s32.totalorder %v1036, 1
    %vm1053 = vcmp.eq.s32.totalorder %v1037, 1
    %vm1054 = vcmp.eq.s32.totalorder %v1038, 1
    %vm1055 = vcmp.eq.s32.totalorder %v1039, 1
    %v1056 = vsel %vm1040, %v913, %v880
    %v1057 = vsel %vm1041, %v915, %v881
    %v1058 = vsel %vm1042, %v917, %v882
    %v1059 = vsel %vm1043, %v919, %v883
    %v1060 = vsel %vm1044, %v921, %v884
    %v1061 = vsel %vm1045, %v923, %v885
    %v1062 = vsel %vm1046, %v925, %v886
    %v1063 = vsel %vm1047, %v927, %v887
    %v1064 = vsel %vm1048, %v929, %v888
    %v1065 = vsel %vm1049, %v931, %v889
    %v1066 = vsel %vm1050, %v933, %v890
    %v1067 = vsel %vm1051, %v935, %v891
    %v1068 = vsel %vm1052, %v937, %v892
    %v1069 = vsel %vm1053, %v939, %v893
    %v1070 = vsel %vm1054, %v941, %v894
    %v1071 = vsel %vm1055, %v943, %v895
    %v1072 = vsel %vm1040, %v945, %v896
    %v1073 = vsel %vm1041, %v947, %v897
    %v1074 = vsel %vm1042, %v949, %v898
    %v1075 = vsel %vm1043, %v951, %v899
    %v1076 = vsel %vm1044, %v953, %v900
    %v1077 = vsel %vm1045, %v955, %v901
    %v1078 = vsel %vm1046, %v957, %v902
    %v1079 = vsel %vm1047, %v959, %v903
    %v1080 = vsel %vm1048, %v961, %v904
    %v1081 = vsel %vm1049, %v963, %v905
    %v1082 = vsel %vm1050, %v965, %v906
    %v1083 = vsel %vm1051, %v967, %v907
    %v1084 = vsel %vm1052, %v969, %v908
    %v1085 = vsel %vm1053, %v971, %v909
    %v1086 = vsel %vm1054, %v973, %v910
    %v1087 = vsel %vm1055, %v975, %v911
    %1088 = vrot.lane.b32.xlu0 %v1056, 120
    %v1089 = vpop.permute.xlu0 %1088
    %1090 = vrot.lane.b32.xlu0 %v1057, 120
    %v1091 = vpop.permute.xlu0 %1090
    %1092 = vrot.lane.b32.xlu0 %v1058, 120
    %v1093 = vpop.permute.xlu0 %1092
    %1094 = vrot.lane.b32.xlu0 %v1059, 120
    %v1095 = vpop.permute.xlu0 %1094
    %1096 = vrot.lane.b32.xlu0 %v1060, 120
    %v1097 = vpop.permute.xlu0 %1096
    %1098 = vrot.lane.b32.xlu0 %v1061, 120
    %v1099 = vpop.permute.xlu0 %1098
    %1100 = vrot.lane.b32.xlu0 %v1062, 120
    %v1101 = vpop.permute.xlu0 %1100
    %1102 = vrot.lane.b32.xlu0 %v1063, 120
    %v1103 = vpop.permute.xlu0 %1102
    %1104 = vrot.lane.b32.xlu0 %v1064, 120
    %v1105 = vpop.permute.xlu0 %1104
    %1106 = vrot.lane.b32.xlu0 %v1065, 120
    %v1107 = vpop.permute.xlu0 %1106
    %1108 = vrot.lane.b32.xlu0 %v1066, 120
    %v1109 = vpop.permute.xlu0 %1108
    %1110 = vrot.lane.b32.xlu0 %v1067, 120
    %v1111 = vpop.permute.xlu0 %1110
    %1112 = vrot.lane.b32.xlu0 %v1068, 120
    %v1113 = vpop.permute.xlu0 %1112
    %1114 = vrot.lane.b32.xlu0 %v1069, 120
    %v1115 = vpop.permute.xlu0 %1114
    %1116 = vrot.lane.b32.xlu0 %v1070, 120
    %v1117 = vpop.permute.xlu0 %1116
    %1118 = vrot.lane.b32.xlu0 %v1071, 120
    %v1119 = vpop.permute.xlu0 %1118
    %1120 = vrot.lane.b32.xlu0 %v1072, 120
    %v1121 = vpop.permute.xlu0 %1120
    %1122 = vrot.lane.b32.xlu0 %v1073, 120
    %v1123 = vpop.permute.xlu0 %1122
    %1124 = vrot.lane.b32.xlu0 %v1074, 120
    %v1125 = vpop.permute.xlu0 %1124
    %1126 = vrot.lane.b32.xlu0 %v1075, 120
    %v1127 = vpop.permute.xlu0 %1126
    %1128 = vrot.lane.b32.xlu0 %v1076, 120
    %v1129 = vpop.permute.xlu0 %1128
    %1130 = vrot.lane.b32.xlu0 %v1077, 120
    %v1131 = vpop.permute.xlu0 %1130
    %1132 = vrot.lane.b32.xlu0 %v1078, 120
    %v1133 = vpop.permute.xlu0 %1132
    %1134 = vrot.lane.b32.xlu0 %v1079, 120
    %v1135 = vpop.permute.xlu0 %1134
    %1136 = vrot.lane.b32.xlu0 %v1080, 120
    %v1137 = vpop.permute.xlu0 %1136
    %1138 = vrot.lane.b32.xlu0 %v1081, 120
    %v1139 = vpop.permute.xlu0 %1138
    %1140 = vrot.lane.b32.xlu0 %v1082, 120
    %v1141 = vpop.permute.xlu0 %1140
    %1142 = vrot.lane.b32.xlu0 %v1083, 120
    %v1143 = vpop.permute.xlu0 %1142
    %1144 = vrot.lane.b32.xlu0 %v1084, 120
    %v1145 = vpop.permute.xlu0 %1144
    %1146 = vrot.lane.b32.xlu0 %v1085, 120
    %v1147 = vpop.permute.xlu0 %1146
    %1148 = vrot.lane.b32.xlu0 %v1086, 120
    %v1149 = vpop.permute.xlu0 %1148
    %1150 = vrot.lane.b32.xlu0 %v1087, 120
    %v1151 = vpop.permute.xlu0 %1150
    %v1152 = vshra.s32 %v560, 3
    %v1153 = vshra.s32 %v561, 3
    %v1154 = vshra.s32 %v562, 3
    %v1155 = vshra.s32 %v563, 3
    %v1156 = vshra.s32 %v564, 3
    %v1157 = vshra.s32 %v565, 3
    %v1158 = vshra.s32 %v566, 3
    %v1159 = vshra.s32 %v567, 3
    %v1160 = vshra.s32 %v568, 3
    %v1161 = vshra.s32 %v569, 3
    %v1162 = vshra.s32 %v570, 3
    %v1163 = vshra.s32 %v571, 3
    %v1164 = vshra.s32 %v572, 3
    %v1165 = vshra.s32 %v573, 3
    %v1166 = vshra.s32 %v574, 3
    %v1167 = vshra.s32 %v575, 3
    %v1168 = vand.u32 %v1152, 1
    %v1169 = vand.u32 %v1153, 1
    %v1170 = vand.u32 %v1154, 1
    %v1171 = vand.u32 %v1155, 1
    %v1172 = vand.u32 %v1156, 1
    %v1173 = vand.u32 %v1157, 1
    %v1174 = vand.u32 %v1158, 1
    %v1175 = vand.u32 %v1159, 1
    %v1176 = vand.u32 %v1160, 1
    %v1177 = vand.u32 %v1161, 1
    %v1178 = vand.u32 %v1162, 1
    %v1179 = vand.u32 %v1163, 1
    %v1180 = vand.u32 %v1164, 1
    %v1181 = vand.u32 %v1165, 1
    %v1182 = vand.u32 %v1166, 1
    %v1183 = vand.u32 %v1167, 1
    %vm1184 = vcmp.eq.s32.totalorder %v1168, 1
    %vm1185 = vcmp.eq.s32.totalorder %v1169, 1
    %vm1186 = vcmp.eq.s32.totalorder %v1170, 1
    %vm1187 = vcmp.eq.s32.totalorder %v1171, 1
    %vm1188 = vcmp.eq.s32.totalorder %v1172, 1
    %vm1189 = vcmp.eq.s32.totalorder %v1173, 1
    %vm1190 = vcmp.eq.s32.totalorder %v1174, 1
    %vm1191 = vcmp.eq.s32.totalorder %v1175, 1
    %vm1192 = vcmp.eq.s32.totalorder %v1176, 1
    %vm1193 = vcmp.eq.s32.totalorder %v1177, 1
    %vm1194 = vcmp.eq.s32.totalorder %v1178, 1
    %vm1195 = vcmp.eq.s32.totalorder %v1179, 1
    %vm1196 = vcmp.eq.s32.totalorder %v1180, 1
    %vm1197 = vcmp.eq.s32.totalorder %v1181, 1
    %vm1198 = vcmp.eq.s32.totalorder %v1182, 1
    %vm1199 = vcmp.eq.s32.totalorder %v1183, 1
    %v1200 = vsel %vm1184, 1, 0
    %v1201 = vsel %vm1185, 1, 0
    %v1202 = vsel %vm1186, 1, 0
    %v1203 = vsel %vm1187, 1, 0
    %v1204 = vsel %vm1188, 1, 0
    %v1205 = vsel %vm1189, 1, 0
    %v1206 = vsel %vm1190, 1, 0
    %v1207 = vsel %vm1191, 1, 0
    %v1208 = vsel %vm1192, 1, 0
    %v1209 = vsel %vm1193, 1, 0
    %v1210 = vsel %vm1194, 1, 0
    %v1211 = vsel %vm1195, 1, 0
    %v1212 = vsel %vm1196, 1, 0
    %v1213 = vsel %vm1197, 1, 0
    %v1214 = vsel %vm1198, 1, 0
    %v1215 = vsel %vm1199, 1, 0
    %vm1216 = vcmp.eq.s32.totalorder %v1200, 1
    %vm1217 = vcmp.eq.s32.totalorder %v1201, 1
    %vm1218 = vcmp.eq.s32.totalorder %v1202, 1
    %vm1219 = vcmp.eq.s32.totalorder %v1203, 1
    %vm1220 = vcmp.eq.s32.totalorder %v1204, 1
    %vm1221 = vcmp.eq.s32.totalorder %v1205, 1
    %vm1222 = vcmp.eq.s32.totalorder %v1206, 1
    %vm1223 = vcmp.eq.s32.totalorder %v1207, 1
    %vm1224 = vcmp.eq.s32.totalorder %v1208, 1
    %vm1225 = vcmp.eq.s32.totalorder %v1209, 1
    %vm1226 = vcmp.eq.s32.totalorder %v1210, 1
    %vm1227 = vcmp.eq.s32.totalorder %v1211, 1
    %vm1228 = vcmp.eq.s32.totalorder %v1212, 1
    %vm1229 = vcmp.eq.s32.totalorder %v1213, 1
    %vm1230 = vcmp.eq.s32.totalorder %v1214, 1
    %vm1231 = vcmp.eq.s32.totalorder %v1215, 1
    %v1232 = vsel %vm1216, %v1089, %v1056
    %v1233 = vsel %vm1217, %v1091, %v1057
    %v1234 = vsel %vm1218, %v1093, %v1058
    %v1235 = vsel %vm1219, %v1095, %v1059
    %v1236 = vsel %vm1220, %v1097, %v1060
    %v1237 = vsel %vm1221, %v1099, %v1061
    %v1238 = vsel %vm1222, %v1101, %v1062
    %v1239 = vsel %vm1223, %v1103, %v1063
    %v1240 = vsel %vm1224, %v1105, %v1064
    %v1241 = vsel %vm1225, %v1107, %v1065
    %v1242 = vsel %vm1226, %v1109, %v1066
    %v1243 = vsel %vm1227, %v1111, %v1067
    %v1244 = vsel %vm1228, %v1113, %v1068
    %v1245 = vsel %vm1229, %v1115, %v1069
    %v1246 = vsel %vm1230, %v1117, %v1070
    %v1247 = vsel %vm1231, %v1119, %v1071
    %v1248 = vsel %vm1216, %v1121, %v1072
    %v1249 = vsel %vm1217, %v1123, %v1073
    %v1250 = vsel %vm1218, %v1125, %v1074
    %v1251 = vsel %vm1219, %v1127, %v1075
    %v1252 = vsel %vm1220, %v1129, %v1076
    %v1253 = vsel %vm1221, %v1131, %v1077
    %v1254 = vsel %vm1222, %v1133, %v1078
    %v1255 = vsel %vm1223, %v1135, %v1079
    %v1256 = vsel %vm1224, %v1137, %v1080
    %v1257 = vsel %vm1225, %v1139, %v1081
    %v1258 = vsel %vm1226, %v1141, %v1082
    %v1259 = vsel %vm1227, %v1143, %v1083
    %v1260 = vsel %vm1228, %v1145, %v1084
    %v1261 = vsel %vm1229, %v1147, %v1085
    %v1262 = vsel %vm1230, %v1149, %v1086
    %v1263 = vsel %vm1231, %v1151, %v1087
    %1264 = vrot.lane.b32.xlu0 %v1232, 112
    %v1265 = vpop.permute.xlu0 %1264
    %1266 = vrot.lane.b32.xlu0 %v1233, 112
    %v1267 = vpop.permute.xlu0 %1266
    %1268 = vrot.lane.b32.xlu0 %v1234, 112
    %v1269 = vpop.permute.xlu0 %1268
    %1270 = vrot.lane.b32.xlu0 %v1235, 112
    %v1271 = vpop.permute.xlu0 %1270
    %1272 = vrot.lane.b32.xlu0 %v1236, 112
    %v1273 = vpop.permute.xlu0 %1272
    %1274 = vrot.lane.b32.xlu0 %v1237, 112
    %v1275 = vpop.permute.xlu0 %1274
    %1276 = vrot.lane.b32.xlu0 %v1238, 112
    %v1277 = vpop.permute.xlu0 %1276
    %1278 = vrot.lane.b32.xlu0 %v1239, 112
    %v1279 = vpop.permute.xlu0 %1278
    %1280 = vrot.lane.b32.xlu0 %v1240, 112
    %v1281 = vpop.permute.xlu0 %1280
    %1282 = vrot.lane.b32.xlu0 %v1241, 112
    %v1283 = vpop.permute.xlu0 %1282
    %1284 = vrot.lane.b32.xlu0 %v1242, 112
    %v1285 = vpop.permute.xlu0 %1284
    %1286 = vrot.lane.b32.xlu0 %v1243, 112
    %v1287 = vpop.permute.xlu0 %1286
    %1288 = vrot.lane.b32.xlu0 %v1244, 112
    %v1289 = vpop.permute.xlu0 %1288
    %1290 = vrot.lane.b32.xlu0 %v1245, 112
    %v1291 = vpop.permute.xlu0 %1290
    %1292 = vrot.lane.b32.xlu0 %v1246, 112
    %v1293 = vpop.permute.xlu0 %1292
    %1294 = vrot.lane.b32.xlu0 %v1247, 112
    %v1295 = vpop.permute.xlu0 %1294
    %1296 = vrot.lane.b32.xlu0 %v1248, 112
    %v1297 = vpop.permute.xlu0 %1296
    %1298 = vrot.lane.b32.xlu0 %v1249, 112
    %v1299 = vpop.permute.xlu0 %1298
    %1300 = vrot.lane.b32.xlu0 %v1250, 112
    %v1301 = vpop.permute.xlu0 %1300
    %1302 = vrot.lane.b32.xlu0 %v1251, 112
    %v1303 = vpop.permute.xlu0 %1302
    %1304 = vrot.lane.b32.xlu0 %v1252, 112
    %v1305 = vpop.permute.xlu0 %1304
    %1306 = vrot.lane.b32.xlu0 %v1253, 112
    %v1307 = vpop.permute.xlu0 %1306
    %1308 = vrot.lane.b32.xlu0 %v1254, 112
    %v1309 = vpop.permute.xlu0 %1308
    %1310 = vrot.lane.b32.xlu0 %v1255, 112
    %v1311 = vpop.permute.xlu0 %1310
    %1312 = vrot.lane.b32.xlu0 %v1256, 112
    %v1313 = vpop.permute.xlu0 %1312
    %1314 = vrot.lane.b32.xlu0 %v1257, 112
    %v1315 = vpop.permute.xlu0 %1314
    %1316 = vrot.lane.b32.xlu0 %v1258, 112
    %v1317 = vpop.permute.xlu0 %1316
    %1318 = vrot.lane.b32.xlu0 %v1259, 112
    %v1319 = vpop.permute.xlu0 %1318
    %1320 = vrot.lane.b32.xlu0 %v1260, 112
    %v1321 = vpop.permute.xlu0 %1320
    %1322 = vrot.lane.b32.xlu0 %v1261, 112
    %v1323 = vpop.permute.xlu0 %1322
    %1324 = vrot.lane.b32.xlu0 %v1262, 112
    %v1325 = vpop.permute.xlu0 %1324
    %1326 = vrot.lane.b32.xlu0 %v1263, 112
    %v1327 = vpop.permute.xlu0 %1326
    %v1328 = vshra.s32 %v560, 4
    %v1329 = vshra.s32 %v561, 4
    %v1330 = vshra.s32 %v562, 4
    %v1331 = vshra.s32 %v563, 4
    %v1332 = vshra.s32 %v564, 4
    %v1333 = vshra.s32 %v565, 4
    %v1334 = vshra.s32 %v566, 4
    %v1335 = vshra.s32 %v567, 4
    %v1336 = vshra.s32 %v568, 4
    %v1337 = vshra.s32 %v569, 4
    %v1338 = vshra.s32 %v570, 4
    %v1339 = vshra.s32 %v571, 4
    %v1340 = vshra.s32 %v572, 4
    %v1341 = vshra.s32 %v573, 4
    %v1342 = vshra.s32 %v574, 4
    %v1343 = vshra.s32 %v575, 4
    %v1344 = vand.u32 %v1328, 1
    %v1345 = vand.u32 %v1329, 1
    %v1346 = vand.u32 %v1330, 1
    %v1347 = vand.u32 %v1331, 1
    %v1348 = vand.u32 %v1332, 1
    %v1349 = vand.u32 %v1333, 1
    %v1350 = vand.u32 %v1334, 1
    %v1351 = vand.u32 %v1335, 1
    %v1352 = vand.u32 %v1336, 1
    %v1353 = vand.u32 %v1337, 1
    %v1354 = vand.u32 %v1338, 1
    %v1355 = vand.u32 %v1339, 1
    %v1356 = vand.u32 %v1340, 1
    %v1357 = vand.u32 %v1341, 1
    %v1358 = vand.u32 %v1342, 1
    %v1359 = vand.u32 %v1343, 1
    %vm1360 = vcmp.eq.s32.totalorder %v1344, 1
    %vm1361 = vcmp.eq.s32.totalorder %v1345, 1
    %vm1362 = vcmp.eq.s32.totalorder %v1346, 1
    %vm1363 = vcmp.eq.s32.totalorder %v1347, 1
    %vm1364 = vcmp.eq.s32.totalorder %v1348, 1
    %vm1365 = vcmp.eq.s32.totalorder %v1349, 1
    %vm1366 = vcmp.eq.s32.totalorder %v1350, 1
    %vm1367 = vcmp.eq.s32.totalorder %v1351, 1
    %vm1368 = vcmp.eq.s32.totalorder %v1352, 1
    %vm1369 = vcmp.eq.s32.totalorder %v1353, 1
    %vm1370 = vcmp.eq.s32.totalorder %v1354, 1
    %vm1371 = vcmp.eq.s32.totalorder %v1355, 1
    %vm1372 = vcmp.eq.s32.totalorder %v1356, 1
    %vm1373 = vcmp.eq.s32.totalorder %v1357, 1
    %vm1374 = vcmp.eq.s32.totalorder %v1358, 1
    %vm1375 = vcmp.eq.s32.totalorder %v1359, 1
    %v1376 = vsel %vm1360, 1, 0
    %v1377 = vsel %vm1361, 1, 0
    %v1378 = vsel %vm1362, 1, 0
    %v1379 = vsel %vm1363, 1, 0
    %v1380 = vsel %vm1364, 1, 0
    %v1381 = vsel %vm1365, 1, 0
    %v1382 = vsel %vm1366, 1, 0
    %v1383 = vsel %vm1367, 1, 0
    %v1384 = vsel %vm1368, 1, 0
    %v1385 = vsel %vm1369, 1, 0
    %v1386 = vsel %vm1370, 1, 0
    %v1387 = vsel %vm1371, 1, 0
    %v1388 = vsel %vm1372, 1, 0
    %v1389 = vsel %vm1373, 1, 0
    %v1390 = vsel %vm1374, 1, 0
    %v1391 = vsel %vm1375, 1, 0
    %vm1392 = vcmp.eq.s32.totalorder %v1376, 1
    %vm1393 = vcmp.eq.s32.totalorder %v1377, 1
    %vm1394 = vcmp.eq.s32.totalorder %v1378, 1
    %vm1395 = vcmp.eq.s32.totalorder %v1379, 1
    %vm1396 = vcmp.eq.s32.totalorder %v1380, 1
    %vm1397 = vcmp.eq.s32.totalorder %v1381, 1
    %vm1398 = vcmp.eq.s32.totalorder %v1382, 1
    %vm1399 = vcmp.eq.s32.totalorder %v1383, 1
    %vm1400 = vcmp.eq.s32.totalorder %v1384, 1
    %vm1401 = vcmp.eq.s32.totalorder %v1385, 1
    %vm1402 = vcmp.eq.s32.totalorder %v1386, 1
    %vm1403 = vcmp.eq.s32.totalorder %v1387, 1
    %vm1404 = vcmp.eq.s32.totalorder %v1388, 1
    %vm1405 = vcmp.eq.s32.totalorder %v1389, 1
    %vm1406 = vcmp.eq.s32.totalorder %v1390, 1
    %vm1407 = vcmp.eq.s32.totalorder %v1391, 1
    %v1408 = vsel %vm1392, %v1265, %v1232
    %v1409 = vsel %vm1393, %v1267, %v1233
    %v1410 = vsel %vm1394, %v1269, %v1234
    %v1411 = vsel %vm1395, %v1271, %v1235
    %v1412 = vsel %vm1396, %v1273, %v1236
    %v1413 = vsel %vm1397, %v1275, %v1237
    %v1414 = vsel %vm1398, %v1277, %v1238
    %v1415 = vsel %vm1399, %v1279, %v1239
    %v1416 = vsel %vm1400, %v1281, %v1240
    %v1417 = vsel %vm1401, %v1283, %v1241
    %v1418 = vsel %vm1402, %v1285, %v1242
    %v1419 = vsel %vm1403, %v1287, %v1243
    %v1420 = vsel %vm1404, %v1289, %v1244
    %v1421 = vsel %vm1405, %v1291, %v1245
    %v1422 = vsel %vm1406, %v1293, %v1246
    %v1423 = vsel %vm1407, %v1295, %v1247
    %v1424 = vsel %vm1392, %v1297, %v1248
    %v1425 = vsel %vm1393, %v1299, %v1249
    %v1426 = vsel %vm1394, %v1301, %v1250
    %v1427 = vsel %vm1395, %v1303, %v1251
    %v1428 = vsel %vm1396, %v1305, %v1252
    %v1429 = vsel %vm1397, %v1307, %v1253
    %v1430 = vsel %vm1398, %v1309, %v1254
    %v1431 = vsel %vm1399, %v1311, %v1255
    %v1432 = vsel %vm1400, %v1313, %v1256
    %v1433 = vsel %vm1401, %v1315, %v1257
    %v1434 = vsel %vm1402, %v1317, %v1258
    %v1435 = vsel %vm1403, %v1319, %v1259
    %v1436 = vsel %vm1404, %v1321, %v1260
    %v1437 = vsel %vm1405, %v1323, %v1261
    %v1438 = vsel %vm1406, %v1325, %v1262
    %v1439 = vsel %vm1407, %v1327, %v1263
    %1440 = vrot.lane.b32.xlu0 %v1408, 96
    %v1441 = vpop.permute.xlu0 %1440
    %1442 = vrot.lane.b32.xlu0 %v1409, 96
    %v1443 = vpop.permute.xlu0 %1442
    %1444 = vrot.lane.b32.xlu0 %v1410, 96
    %v1445 = vpop.permute.xlu0 %1444
    %1446 = vrot.lane.b32.xlu0 %v1411, 96
    %v1447 = vpop.permute.xlu0 %1446
    %1448 = vrot.lane.b32.xlu0 %v1412, 96
    %v1449 = vpop.permute.xlu0 %1448
    %1450 = vrot.lane.b32.xlu0 %v1413, 96
    %v1451 = vpop.permute.xlu0 %1450
    %1452 = vrot.lane.b32.xlu0 %v1414, 96
    %v1453 = vpop.permute.xlu0 %1452
    %1454 = vrot.lane.b32.xlu0 %v1415, 96
    %v1455 = vpop.permute.xlu0 %1454
    %1456 = vrot.lane.b32.xlu0 %v1416, 96
    %v1457 = vpop.permute.xlu0 %1456
    %1458 = vrot.lane.b32.xlu0 %v1417, 96
    %v1459 = vpop.permute.xlu0 %1458
    %1460 = vrot.lane.b32.xlu0 %v1418, 96
    %v1461 = vpop.permute.xlu0 %1460
    %1462 = vrot.lane.b32.xlu0 %v1419, 96
    %v1463 = vpop.permute.xlu0 %1462
    %1464 = vrot.lane.b32.xlu0 %v1420, 96
    %v1465 = vpop.permute.xlu0 %1464
    %1466 = vrot.lane.b32.xlu0 %v1421, 96
    %v1467 = vpop.permute.xlu0 %1466
    %1468 = vrot.lane.b32.xlu0 %v1422, 96
    %v1469 = vpop.permute.xlu0 %1468
    %1470 = vrot.lane.b32.xlu0 %v1423, 96
    %v1471 = vpop.permute.xlu0 %1470
    %1472 = vrot.lane.b32.xlu0 %v1424, 96
    %v1473 = vpop.permute.xlu0 %1472
    %1474 = vrot.lane.b32.xlu0 %v1425, 96
    %v1475 = vpop.permute.xlu0 %1474
    %1476 = vrot.lane.b32.xlu0 %v1426, 96
    %v1477 = vpop.permute.xlu0 %1476
    %1478 = vrot.lane.b32.xlu0 %v1427, 96
    %v1479 = vpop.permute.xlu0 %1478
    %1480 = vrot.lane.b32.xlu0 %v1428, 96
    %v1481 = vpop.permute.xlu0 %1480
    %1482 = vrot.lane.b32.xlu0 %v1429, 96
    %v1483 = vpop.permute.xlu0 %1482
    %1484 = vrot.lane.b32.xlu0 %v1430, 96
    %v1485 = vpop.permute.xlu0 %1484
    %1486 = vrot.lane.b32.xlu0 %v1431, 96
    %v1487 = vpop.permute.xlu0 %1486
    %1488 = vrot.lane.b32.xlu0 %v1432, 96
    %v1489 = vpop.permute.xlu0 %1488
    %1490 = vrot.lane.b32.xlu0 %v1433, 96
    %v1491 = vpop.permute.xlu0 %1490
    %1492 = vrot.lane.b32.xlu0 %v1434, 96
    %v1493 = vpop.permute.xlu0 %1492
    %1494 = vrot.lane.b32.xlu0 %v1435, 96
    %v1495 = vpop.permute.xlu0 %1494
    %1496 = vrot.lane.b32.xlu0 %v1436, 96
    %v1497 = vpop.permute.xlu0 %1496
    %1498 = vrot.lane.b32.xlu0 %v1437, 96
    %v1499 = vpop.permute.xlu0 %1498
    %1500 = vrot.lane.b32.xlu0 %v1438, 96
    %v1501 = vpop.permute.xlu0 %1500
    %1502 = vrot.lane.b32.xlu0 %v1439, 96
    %v1503 = vpop.permute.xlu0 %1502
    %v1504 = vshra.s32 %v560, 5
    %v1505 = vshra.s32 %v561, 5
    %v1506 = vshra.s32 %v562, 5
    %v1507 = vshra.s32 %v563, 5
    %v1508 = vshra.s32 %v564, 5
    %v1509 = vshra.s32 %v565, 5
    %v1510 = vshra.s32 %v566, 5
    %v1511 = vshra.s32 %v567, 5
    %v1512 = vshra.s32 %v568, 5
    %v1513 = vshra.s32 %v569, 5
    %v1514 = vshra.s32 %v570, 5
    %v1515 = vshra.s32 %v571, 5
    %v1516 = vshra.s32 %v572, 5
    %v1517 = vshra.s32 %v573, 5
    %v1518 = vshra.s32 %v574, 5
    %v1519 = vshra.s32 %v575, 5
    %v1520 = vand.u32 %v1504, 1
    %v1521 = vand.u32 %v1505, 1
    %v1522 = vand.u32 %v1506, 1
    %v1523 = vand.u32 %v1507, 1
    %v1524 = vand.u32 %v1508, 1
    %v1525 = vand.u32 %v1509, 1
    %v1526 = vand.u32 %v1510, 1
    %v1527 = vand.u32 %v1511, 1
    %v1528 = vand.u32 %v1512, 1
    %v1529 = vand.u32 %v1513, 1
    %v1530 = vand.u32 %v1514, 1
    %v1531 = vand.u32 %v1515, 1
    %v1532 = vand.u32 %v1516, 1
    %v1533 = vand.u32 %v1517, 1
    %v1534 = vand.u32 %v1518, 1
    %v1535 = vand.u32 %v1519, 1
    %vm1536 = vcmp.eq.s32.totalorder %v1520, 1
    %vm1537 = vcmp.eq.s32.totalorder %v1521, 1
    %vm1538 = vcmp.eq.s32.totalorder %v1522, 1
    %vm1539 = vcmp.eq.s32.totalorder %v1523, 1
    %vm1540 = vcmp.eq.s32.totalorder %v1524, 1
    %vm1541 = vcmp.eq.s32.totalorder %v1525, 1
    %vm1542 = vcmp.eq.s32.totalorder %v1526, 1
    %vm1543 = vcmp.eq.s32.totalorder %v1527, 1
    %vm1544 = vcmp.eq.s32.totalorder %v1528, 1
    %vm1545 = vcmp.eq.s32.totalorder %v1529, 1
    %vm1546 = vcmp.eq.s32.totalorder %v1530, 1
    %vm1547 = vcmp.eq.s32.totalorder %v1531, 1
    %vm1548 = vcmp.eq.s32.totalorder %v1532, 1
    %vm1549 = vcmp.eq.s32.totalorder %v1533, 1
    %vm1550 = vcmp.eq.s32.totalorder %v1534, 1
    %vm1551 = vcmp.eq.s32.totalorder %v1535, 1
    %v1552 = vsel %vm1536, 1, 0
    %v1553 = vsel %vm1537, 1, 0
    %v1554 = vsel %vm1538, 1, 0
    %v1555 = vsel %vm1539, 1, 0
    %v1556 = vsel %vm1540, 1, 0
    %v1557 = vsel %vm1541, 1, 0
    %v1558 = vsel %vm1542, 1, 0
    %v1559 = vsel %vm1543, 1, 0
    %v1560 = vsel %vm1544, 1, 0
    %v1561 = vsel %vm1545, 1, 0
    %v1562 = vsel %vm1546, 1, 0
    %v1563 = vsel %vm1547, 1, 0
    %v1564 = vsel %vm1548, 1, 0
    %v1565 = vsel %vm1549, 1, 0
    %v1566 = vsel %vm1550, 1, 0
    %v1567 = vsel %vm1551, 1, 0
    %vm1568 = vcmp.eq.s32.totalorder %v1552, 1
    %vm1569 = vcmp.eq.s32.totalorder %v1553, 1
    %vm1570 = vcmp.eq.s32.totalorder %v1554, 1
    %vm1571 = vcmp.eq.s32.totalorder %v1555, 1
    %vm1572 = vcmp.eq.s32.totalorder %v1556, 1
    %vm1573 = vcmp.eq.s32.totalorder %v1557, 1
    %vm1574 = vcmp.eq.s32.totalorder %v1558, 1
    %vm1575 = vcmp.eq.s32.totalorder %v1559, 1
    %vm1576 = vcmp.eq.s32.totalorder %v1560, 1
    %vm1577 = vcmp.eq.s32.totalorder %v1561, 1
    %vm1578 = vcmp.eq.s32.totalorder %v1562, 1
    %vm1579 = vcmp.eq.s32.totalorder %v1563, 1
    %vm1580 = vcmp.eq.s32.totalorder %v1564, 1
    %vm1581 = vcmp.eq.s32.totalorder %v1565, 1
    %vm1582 = vcmp.eq.s32.totalorder %v1566, 1
    %vm1583 = vcmp.eq.s32.totalorder %v1567, 1
    %v1584 = vsel %vm1568, %v1441, %v1408
    %v1585 = vsel %vm1569, %v1443, %v1409
    %v1586 = vsel %vm1570, %v1445, %v1410
    %v1587 = vsel %vm1571, %v1447, %v1411
    %v1588 = vsel %vm1572, %v1449, %v1412
    %v1589 = vsel %vm1573, %v1451, %v1413
    %v1590 = vsel %vm1574, %v1453, %v1414
    %v1591 = vsel %vm1575, %v1455, %v1415
    %v1592 = vsel %vm1576, %v1457, %v1416
    %v1593 = vsel %vm1577, %v1459, %v1417
    %v1594 = vsel %vm1578, %v1461, %v1418
    %v1595 = vsel %vm1579, %v1463, %v1419
    %v1596 = vsel %vm1580, %v1465, %v1420
    %v1597 = vsel %vm1581, %v1467, %v1421
    %v1598 = vsel %vm1582, %v1469, %v1422
    %v1599 = vsel %vm1583, %v1471, %v1423
    %v1600 = vsel %vm1568, %v1473, %v1424
    %v1601 = vsel %vm1569, %v1475, %v1425
    %v1602 = vsel %vm1570, %v1477, %v1426
    %v1603 = vsel %vm1571, %v1479, %v1427
    %v1604 = vsel %vm1572, %v1481, %v1428
    %v1605 = vsel %vm1573, %v1483, %v1429
    %v1606 = vsel %vm1574, %v1485, %v1430
    %v1607 = vsel %vm1575, %v1487, %v1431
    %v1608 = vsel %vm1576, %v1489, %v1432
    %v1609 = vsel %vm1577, %v1491, %v1433
    %v1610 = vsel %vm1578, %v1493, %v1434
    %v1611 = vsel %vm1579, %v1495, %v1435
    %v1612 = vsel %vm1580, %v1497, %v1436
    %v1613 = vsel %vm1581, %v1499, %v1437
    %v1614 = vsel %vm1582, %v1501, %v1438
    %v1615 = vsel %vm1583, %v1503, %v1439
    %1616 = vrot.lane.b32.xlu0 %v1584, 64
    %v1617 = vpop.permute.xlu0 %1616
    %1618 = vrot.lane.b32.xlu0 %v1585, 64
    %v1619 = vpop.permute.xlu0 %1618
    %1620 = vrot.lane.b32.xlu0 %v1586, 64
    %v1621 = vpop.permute.xlu0 %1620
    %1622 = vrot.lane.b32.xlu0 %v1587, 64
    %v1623 = vpop.permute.xlu0 %1622
    %1624 = vrot.lane.b32.xlu0 %v1588, 64
    %v1625 = vpop.permute.xlu0 %1624
    %1626 = vrot.lane.b32.xlu0 %v1589, 64
    %v1627 = vpop.permute.xlu0 %1626
    %1628 = vrot.lane.b32.xlu0 %v1590, 64
    %v1629 = vpop.permute.xlu0 %1628
    %1630 = vrot.lane.b32.xlu0 %v1591, 64
    %v1631 = vpop.permute.xlu0 %1630
    %1632 = vrot.lane.b32.xlu0 %v1592, 64
    %v1633 = vpop.permute.xlu0 %1632
    %1634 = vrot.lane.b32.xlu0 %v1593, 64
    %v1635 = vpop.permute.xlu0 %1634
    %1636 = vrot.lane.b32.xlu0 %v1594, 64
    %v1637 = vpop.permute.xlu0 %1636
    %1638 = vrot.lane.b32.xlu0 %v1595, 64
    %v1639 = vpop.permute.xlu0 %1638
    %1640 = vrot.lane.b32.xlu0 %v1596, 64
    %v1641 = vpop.permute.xlu0 %1640
    %1642 = vrot.lane.b32.xlu0 %v1597, 64
    %v1643 = vpop.permute.xlu0 %1642
    %1644 = vrot.lane.b32.xlu0 %v1598, 64
    %v1645 = vpop.permute.xlu0 %1644
    %1646 = vrot.lane.b32.xlu0 %v1599, 64
    %v1647 = vpop.permute.xlu0 %1646
    %1648 = vrot.lane.b32.xlu0 %v1600, 64
    %v1649 = vpop.permute.xlu0 %1648
    %1650 = vrot.lane.b32.xlu0 %v1601, 64
    %v1651 = vpop.permute.xlu0 %1650
    %1652 = vrot.lane.b32.xlu0 %v1602, 64
    %v1653 = vpop.permute.xlu0 %1652
    %1654 = vrot.lane.b32.xlu0 %v1603, 64
    %v1655 = vpop.permute.xlu0 %1654
    %1656 = vrot.lane.b32.xlu0 %v1604, 64
    %v1657 = vpop.permute.xlu0 %1656
    %1658 = vrot.lane.b32.xlu0 %v1605, 64
    %v1659 = vpop.permute.xlu0 %1658
    %1660 = vrot.lane.b32.xlu0 %v1606, 64
    %v1661 = vpop.permute.xlu0 %1660
    %1662 = vrot.lane.b32.xlu0 %v1607, 64
    %v1663 = vpop.permute.xlu0 %1662
    %1664 = vrot.lane.b32.xlu0 %v1608, 64
    %v1665 = vpop.permute.xlu0 %1664
    %1666 = vrot.lane.b32.xlu0 %v1609, 64
    %v1667 = vpop.permute.xlu0 %1666
    %1668 = vrot.lane.b32.xlu0 %v1610, 64
    %v1669 = vpop.permute.xlu0 %1668
    %1670 = vrot.lane.b32.xlu0 %v1611, 64
    %v1671 = vpop.permute.xlu0 %1670
    %1672 = vrot.lane.b32.xlu0 %v1612, 64
    %v1673 = vpop.permute.xlu0 %1672
    %1674 = vrot.lane.b32.xlu0 %v1613, 64
    %v1675 = vpop.permute.xlu0 %1674
    %1676 = vrot.lane.b32.xlu0 %v1614, 64
    %v1677 = vpop.permute.xlu0 %1676
    %1678 = vrot.lane.b32.xlu0 %v1615, 64
    %v1679 = vpop.permute.xlu0 %1678
    %v1680 = vshra.s32 %v560, 6
    %v1681 = vshra.s32 %v561, 6
    %v1682 = vshra.s32 %v562, 6
    %v1683 = vshra.s32 %v563, 6
    %v1684 = vshra.s32 %v564, 6
    %v1685 = vshra.s32 %v565, 6
    %v1686 = vshra.s32 %v566, 6
    %v1687 = vshra.s32 %v567, 6
    %v1688 = vshra.s32 %v568, 6
    %v1689 = vshra.s32 %v569, 6
    %v1690 = vshra.s32 %v570, 6
    %v1691 = vshra.s32 %v571, 6
    %v1692 = vshra.s32 %v572, 6
    %v1693 = vshra.s32 %v573, 6
    %v1694 = vshra.s32 %v574, 6
    %v1695 = vshra.s32 %v575, 6
    %v1696 = vand.u32 %v1680, 1
    %v1697 = vand.u32 %v1681, 1
    %v1698 = vand.u32 %v1682, 1
    %v1699 = vand.u32 %v1683, 1
    %v1700 = vand.u32 %v1684, 1
    %v1701 = vand.u32 %v1685, 1
    %v1702 = vand.u32 %v1686, 1
    %v1703 = vand.u32 %v1687, 1
    %v1704 = vand.u32 %v1688, 1
    %v1705 = vand.u32 %v1689, 1
    %v1706 = vand.u32 %v1690, 1
    %v1707 = vand.u32 %v1691, 1
    %v1708 = vand.u32 %v1692, 1
    %v1709 = vand.u32 %v1693, 1
    %v1710 = vand.u32 %v1694, 1
    %v1711 = vand.u32 %v1695, 1
    %vm1712 = vcmp.eq.s32.totalorder %v1696, 1
    %vm1713 = vcmp.eq.s32.totalorder %v1697, 1
    %vm1714 = vcmp.eq.s32.totalorder %v1698, 1
    %vm1715 = vcmp.eq.s32.totalorder %v1699, 1
    %vm1716 = vcmp.eq.s32.totalorder %v1700, 1
    %vm1717 = vcmp.eq.s32.totalorder %v1701, 1
    %vm1718 = vcmp.eq.s32.totalorder %v1702, 1
    %vm1719 = vcmp.eq.s32.totalorder %v1703, 1
    %vm1720 = vcmp.eq.s32.totalorder %v1704, 1
    %vm1721 = vcmp.eq.s32.totalorder %v1705, 1
    %vm1722 = vcmp.eq.s32.totalorder %v1706, 1
    %vm1723 = vcmp.eq.s32.totalorder %v1707, 1
    %vm1724 = vcmp.eq.s32.totalorder %v1708, 1
    %vm1725 = vcmp.eq.s32.totalorder %v1709, 1
    %vm1726 = vcmp.eq.s32.totalorder %v1710, 1
    %vm1727 = vcmp.eq.s32.totalorder %v1711, 1
    %v1728 = vsel %vm1712, 1, 0
    %v1729 = vsel %vm1713, 1, 0
    %v1730 = vsel %vm1714, 1, 0
    %v1731 = vsel %vm1715, 1, 0
    %v1732 = vsel %vm1716, 1, 0
    %v1733 = vsel %vm1717, 1, 0
    %v1734 = vsel %vm1718, 1, 0
    %v1735 = vsel %vm1719, 1, 0
    %v1736 = vsel %vm1720, 1, 0
    %v1737 = vsel %vm1721, 1, 0
    %v1738 = vsel %vm1722, 1, 0
    %v1739 = vsel %vm1723, 1, 0
    %v1740 = vsel %vm1724, 1, 0
    %v1741 = vsel %vm1725, 1, 0
    %v1742 = vsel %vm1726, 1, 0
    %v1743 = vsel %vm1727, 1, 0
    %vm1744 = vcmp.eq.s32.totalorder %v1728, 1
    %vm1745 = vcmp.eq.s32.totalorder %v1729, 1
    %vm1746 = vcmp.eq.s32.totalorder %v1730, 1
    %vm1747 = vcmp.eq.s32.totalorder %v1731, 1
    %vm1748 = vcmp.eq.s32.totalorder %v1732, 1
    %vm1749 = vcmp.eq.s32.totalorder %v1733, 1
    %vm1750 = vcmp.eq.s32.totalorder %v1734, 1
    %vm1751 = vcmp.eq.s32.totalorder %v1735, 1
    %vm1752 = vcmp.eq.s32.totalorder %v1736, 1
    %vm1753 = vcmp.eq.s32.totalorder %v1737, 1
    %vm1754 = vcmp.eq.s32.totalorder %v1738, 1
    %vm1755 = vcmp.eq.s32.totalorder %v1739, 1
    %vm1756 = vcmp.eq.s32.totalorder %v1740, 1
    %vm1757 = vcmp.eq.s32.totalorder %v1741, 1
    %vm1758 = vcmp.eq.s32.totalorder %v1742, 1
    %vm1759 = vcmp.eq.s32.totalorder %v1743, 1
    %v1760 = vsel %vm1744, %v1617, %v1584
    %v1761 = vsel %vm1745, %v1619, %v1585
    %v1762 = vsel %vm1746, %v1621, %v1586
    %v1763 = vsel %vm1747, %v1623, %v1587
    %v1764 = vsel %vm1748, %v1625, %v1588
    %v1765 = vsel %vm1749, %v1627, %v1589
    %v1766 = vsel %vm1750, %v1629, %v1590
    %v1767 = vsel %vm1751, %v1631, %v1591
    %v1768 = vsel %vm1752, %v1633, %v1592
    %v1769 = vsel %vm1753, %v1635, %v1593
    %v1770 = vsel %vm1754, %v1637, %v1594
    %v1771 = vsel %vm1755, %v1639, %v1595
    %v1772 = vsel %vm1756, %v1641, %v1596
    %v1773 = vsel %vm1757, %v1643, %v1597
    %v1774 = vsel %vm1758, %v1645, %v1598
    %v1775 = vsel %vm1759, %v1647, %v1599
    %v1776 = vsel %vm1744, %v1649, %v1600
    %v1777 = vsel %vm1745, %v1651, %v1601
    %v1778 = vsel %vm1746, %v1653, %v1602
    %v1779 = vsel %vm1747, %v1655, %v1603
    %v1780 = vsel %vm1748, %v1657, %v1604
    %v1781 = vsel %vm1749, %v1659, %v1605
    %v1782 = vsel %vm1750, %v1661, %v1606
    %v1783 = vsel %vm1751, %v1663, %v1607
    %v1784 = vsel %vm1752, %v1665, %v1608
    %v1785 = vsel %vm1753, %v1667, %v1609
    %v1786 = vsel %vm1754, %v1669, %v1610
    %v1787 = vsel %vm1755, %v1671, %v1611
    %v1788 = vsel %vm1756, %v1673, %v1612
    %v1789 = vsel %vm1757, %v1675, %v1613
    %v1790 = vsel %vm1758, %v1677, %v1614
    %v1791 = vsel %vm1759, %v1679, %v1615
    %v1792 = vadd.f32 %v1760, %v1761
    %v1793 = vadd.f32 %v1792, %v1762
    %v1794 = vadd.f32 %v1793, %v1763
    %v1795 = vadd.f32 %v1794, %v1764
    %v1796 = vadd.f32 %v1795, %v1765
    %v1797 = vadd.f32 %v1796, %v1766
    %v1798 = vadd.f32 %v1797, %v1767
    %v1799 = vadd.f32 %v1798, %v1768
    %v1800 = vadd.f32 %v1799, %v1769
    %v1801 = vadd.f32 %v1800, %v1770
    %v1802 = vadd.f32 %v1801, %v1771
    %v1803 = vadd.f32 %v1802, %v1772
    %v1804 = vadd.f32 %v1803, %v1773
    %v1805 = vadd.f32 %v1804, %v1774
    %v1806 = vadd.f32 %v1805, %v1775
    %v1807 = vrot.slane %v1806, 4
    %v1808 = vadd.f32 %v1806, %v1807
    %v1809 = vrot.slane %v1808, 2
    %v1810 = vadd.f32 %v1808, %v1809
    %v1811 = vrot.slane %v1810, 1
    %v1812 = vadd.f32 %v1810, %v1811
    %v1813 = vadd.f32 %v1776, %v1777
    %v1814 = vadd.f32 %v1813, %v1778
    %v1815 = vadd.f32 %v1814, %v1779
    %v1816 = vadd.f32 %v1815, %v1780
    %v1817 = vadd.f32 %v1816, %v1781
    %v1818 = vadd.f32 %v1817, %v1782
    %v1819 = vadd.f32 %v1818, %v1783
    %v1820 = vadd.f32 %v1819, %v1784
    %v1821 = vadd.f32 %v1820, %v1785
    %v1822 = vadd.f32 %v1821, %v1786
    %v1823 = vadd.f32 %v1822, %v1787
    %v1824 = vadd.f32 %v1823, %v1788
    %v1825 = vadd.f32 %v1824, %v1789
    %v1826 = vadd.f32 %v1825, %v1790
    %v1827 = vadd.f32 %v1826, %v1791
    %v1828 = vrot.slane %v1827, 4
    %v1829 = vadd.f32 %v1827, %v1828
    %v1830 = vrot.slane %v1829, 2
    %v1831 = vadd.f32 %v1829, %v1830
    %v1832 = vrot.slane %v1831, 1
    %v1833 = vadd.f32 %v1831, %v1832
    %p1834 = scmp.eq.s32.totalorder 0, 0
    // Predicated region
    $region10: #{tpu_custom_call.1} parent=1 // pred_check
      %p1835 = pneg %p1834
    $region11: #{tpu_custom_call.1} parent=1 // pred_check_branch
      %1837 = sbr.rel (%p1835) target = $region13
    $region12: #{tpu_custom_call.1} parent=1 // pred_region
      %1838 = vst [vmem:[#allocation2] sm:$0x1] 0.0
      %1839 = vst [vmem:[#allocation2 + $0x1] sm:$0x1] 0.0
    $region13: #{tpu_custom_call.1} parent=1 // pred_fallthru
      _
    %v1840 = vld [vmem:[#allocation2] sm:$0x1]
    %v1841 = vld [vmem:[#allocation2 + $0x1] sm:$0x1]
    %v1842 = vadd.f32 %v1840, %v1812
    %v1843 = vadd.f32 %v1841, %v1833
    %1844 = vst [vmem:[#allocation2] sm:$0x1] %v1842
    %1845 = vst [vmem:[#allocation2 + $0x1] sm:$0x1] %v1843
    // Predicated region
    $region14: #{tpu_custom_call.1} parent=1 // pred_check
      _
    $region15: #{tpu_custom_call.1} parent=1 // pred_check_branch
      %1847 = sbr.rel (0) target = $region17
    $region16: #{tpu_custom_call.1} parent=1 // pred_region
      %s1849 = ssub.s32 32, 32
      %1850 = vsyncadd [#allocation3], %s1849
      %s1851 = sshll.u32 [#allocation2], 4
      %s1852 = int_to_ptr.vmem [resolvable:$true] %s1851
      %1857 = dma.vmem_to_hbm [thread:$0]  %s1852, 32, %s2, [#allocation3], 16, 16, 1
    $region17: #{tpu_custom_call.1} parent=1 // pred_fallthru
      _
    // Predicated region
    $region18: #{tpu_custom_call.1} parent=1 // pred_check
      _
    $region19: #{tpu_custom_call.1} parent=1 // pred_check_branch
      %1859 = sbr.rel (0) target = $region21
    $region20: #{tpu_custom_call.1} parent=1 // pred_region
      %1860 = dma.done [#allocation3], 32
    $region21: #{tpu_custom_call.1} parent=1 // pred_fallthru
      _
    %1861 = vsyncpa [#allocation3], 1

</llo_original>
